<compile_context>
chip_gen: v6e
topology: v6e:2x2x1
jax: 0.10.0
libtpu: 0.0.40
codegen_flags: <defaults>
</compile_context>

<pallas_src>
import math

import jax
import jax.numpy as jnp
from jax.experimental import pallas as pl
from jax.experimental.pallas import tpu as pltpu


# ----------------------------------------------------------------------------
# Fused kernel: all transformer layers + classifier head, one batch element
# per leading grid index.
# ----------------------------------------------------------------------------
def fused_transformer_kernel(emb_ref,
                             wqkv_ref, bqkv_ref,
                             w1_ref, b1_ref, w2_ref, b2_ref,
                             ln_ref,
                             wout_ref, bout_ref,
                             layer_out_ref, logp_ref,
                             x_scratch):
    l = pl.program_id(1)
    num_layers = pl.num_programs(1)

    # First layer step of each batch element: load the embedded+positional tokens.
    @pl.when(l == 0)
    def _():
        x_scratch[...] = emb_ref[0]

    x = x_scratch[...]                                   # [S, D] f32 resident activation
    d_model = x.shape[-1]
    inv_sqrt_d = 1.0 / math.sqrt(float(d_model))

    # ---- self-attention: single fused QKV matmul (bf16 weights, f32 accumulate) ----
    qkv = jnp.dot(x.astype(jnp.bfloat16), wqkv_ref[0],
                  preferred_element_type=jnp.float32) + bqkv_ref[0]          # [S, 3D]
    q = qkv[:, :d_model]
    k = qkv[:, d_model:2 * d_model]
    v = qkv[:, 2 * d_model:]

    # q @ k^T without materializing a transposed copy of k (MXU consumes it directly)
    scores = jax.lax.dot_general(
        q, k, dimension_numbers=(((1,), (1,)), ((), ())),
        preferred_element_type=jnp.float32) * inv_sqrt_d                     # [S, S]
    scores = scores - jnp.max(scores, axis=-1, keepdims=True)
    e = jnp.exp(scores)
    denom = jnp.sum(e, axis=-1, keepdims=True)
    attn_w = e * pl.reciprocal(denom, approx=False)      # exact: accuracy over layers
    attn_out = jnp.dot(attn_w, v, preferred_element_type=jnp.float32)        # [S, D]

    ln = ln_ref[0]                                       # [4, D]
    g1, be1, g2, be2 = ln[0:1], ln[1:2], ln[2:3], ln[3:4]

    # ---- residual + LayerNorm 1 (single-pass stats: var = E[h^2] - mu^2, eps=1e-5) ----
    h = attn_out + x
    mu = jnp.mean(h, axis=-1, keepdims=True)
    msq = jnp.mean(h * h, axis=-1, keepdims=True)
    h1 = (h - mu) * jax.lax.rsqrt(msq - mu * mu + 1e-5) * g1 + be1

    # ---- feedforward: Linear -> ReLU -> Linear (bf16 weights, f32 accumulate) ----
    ff = jnp.dot(h1.astype(jnp.bfloat16), w1_ref[0],
                 preferred_element_type=jnp.float32) + b1_ref[0]
    ff = jnp.maximum(ff, 0.0)
    ff = jnp.dot(ff.astype(jnp.bfloat16), w2_ref[0],
                 preferred_element_type=jnp.float32) + b2_ref[0]

    # ---- residual + LayerNorm 2 ----
    h2 = ff + h1
    mu2 = jnp.mean(h2, axis=-1, keepdims=True)
    msq2 = jnp.mean(h2 * h2, axis=-1, keepdims=True)
    out = (h2 - mu2) * jax.lax.rsqrt(msq2 - mu2 * mu2 + 1e-5) * g2 + be2

    x_scratch[...] = out                                 # carry activation to next layer
    layer_out_ref[0, 0] = out                            # attn_maps entry for this layer

    # ---- classifier head + log_softmax, fused into the last layer step ----
    @pl.when(l == num_layers - 1)
    def _():
        logits = jnp.dot(out.astype(jnp.bfloat16), wout_ref[...],
                         preferred_element_type=jnp.float32) + bout_ref[...]  # [S, NPAD] f32
        m = jnp.max(logits, axis=-1, keepdims=True)      # keep: shields -1e9 padded lanes
        z = logits - m
        lse = jnp.log(jnp.sum(jnp.exp(z), axis=-1, keepdims=True))
        logp_ref[0] = z - lse                            # lane-dense padded log_softmax


# ----------------------------------------------------------------------------
# Wrapper
# ----------------------------------------------------------------------------
def make_transformer_forward(batch, seq_len, d_model, d_internal, num_classes,
                             num_layers, npad=128):
    grid_spec = pltpu.PrefetchScalarGridSpec(
        num_scalar_prefetch=0,
        grid=(batch, num_layers),
        in_specs=[
            pl.BlockSpec((1, seq_len, d_model), lambda b, l: (b, 0, 0)),           # embedded+pos
            pl.BlockSpec((1, d_model, 3 * d_model), lambda b, l: (l, 0, 0)),       # wqkv  [L,D,3D] bf16
            pl.BlockSpec((1, 1, 3 * d_model), lambda b, l: (l, 0, 0)),             # bqkv  [L,1,3D] f32
            pl.BlockSpec((1, d_model, d_internal), lambda b, l: (l, 0, 0)),        # w1    [L,D,H]  bf16
            pl.BlockSpec((1, 1, d_internal), lambda b, l: (l, 0, 0)),              # b1    [L,1,H]  f32
            pl.BlockSpec((1, d_internal, d_model), lambda b, l: (l, 0, 0)),        # w2    [L,H,D]  bf16
            pl.BlockSpec((1, 1, d_model), lambda b, l: (l, 0, 0)),                 # b2    [L,1,D]  f32
            pl.BlockSpec((1, 4, d_model), lambda b, l: (l, 0, 0)),                 # layernorm params
            pl.BlockSpec((d_model, npad), lambda b, l: (0, 0)),                    # w_out (lane-padded)
            pl.BlockSpec((1, npad), lambda b, l: (0, 0)),                          # b_out (lane-padded)
        ],
        out_specs=[
            pl.BlockSpec((1, 1, seq_len, d_model), lambda b, l: (b, l, 0, 0)),     # per-layer outputs
            pl.BlockSpec((1, seq_len, npad), lambda b, l: (b, 0, 0)),              # padded log-probs
        ],
        scratch_shapes=[pltpu.VMEM((seq_len, d_model), jnp.float32)],
    )
    fused_call = pl.pallas_call(
        fused_transformer_kernel,
        out_shape=(jax.ShapeDtypeStruct((batch, num_layers, seq_len, d_model), jnp.float32),
                   jax.ShapeDtypeStruct((batch, seq_len, npad), jnp.float32)),
        grid_spec=grid_spec,
        compiler_params=pltpu.CompilerParams(
            dimension_semantics=("parallel", "arbitrary")),
    )

    @jax.jit
    def forward(indices, params):
        # indices: [B, S]. Token-id gather + positional add stay as plain-JAX glue.
        embedded = jnp.take(params["embedding"], indices, axis=0) \
                   + params["pos_embedding"][:seq_len][None, :, :]             # [B, S, D] f32
        layer_outs, logp_pad = fused_call(
            embedded,
            params["wqkv"], params["bqkv"],
            params["w1"], params["b1"], params["w2"], params["b2"],
            params["ln"], params["w_out_pad"], params["b_out_pad"])
        return logp_pad[:, :, :num_classes], layer_outs

    return forward


# ----------------------------------------------------------------------------
# Parameter initialization (deterministic, mimics PyTorch default inits)
# ----------------------------------------------------------------------------
def _init_linear(key, fan_in, fan_out):
    k1, k2 = jax.random.split(key)
    bound = 1.0 / math.sqrt(fan_in)
    w = jax.random.uniform(k1, (fan_in, fan_out), jnp.float32, -bound, bound)  # [in, out]
    b = jax.random.uniform(k2, (1, fan_out), jnp.float32, -bound, bound)
    return w, b


def init_transformer_params(key, vocab_size, num_positions, d_model, d_internal,
                            num_classes, num_layers, npad=128):
    keys = jax.random.split(key, 3 + num_layers)
    wqkv_l, bqkv_l, w1_l, b1_l, w2_l, b2_l, ln_l = [], [], [], [], [], [], []
    for li in range(num_layers):
        lk = jax.random.split(keys[2 + li], 5)
        wq, bq = _init_linear(lk[0], d_model, d_model)
        wk, bk = _init_linear(lk[1], d_model, d_model)
        wv, bv = _init_linear(lk[2], d_model, d_model)
        w1, b1 = _init_linear(lk[3], d_model, d_internal)
        w2, b2 = _init_linear(lk[4], d_internal, d_model)
        wqkv_l.append(jnp.concatenate([wq, wk, wv], axis=1))               # [D, 3D]
        bqkv_l.append(jnp.concatenate([bq, bk, bv], axis=1))               # [1, 3D]
        w1_l.append(w1); b1_l.append(b1)
        w2_l.append(w2); b2_l.append(b2)
        ln_l.append(jnp.stack([jnp.ones((d_model,), jnp.float32),
                               jnp.zeros((d_model,), jnp.float32),
                               jnp.ones((d_model,), jnp.float32),
                               jnp.zeros((d_model,), jnp.float32)]))       # [4, D]

    w_out, b_out = _init_linear(keys[2 + num_layers], d_model, num_classes)
    # lane-dense padded head: zero weight columns, -1e9 bias on padded columns
    w_out_pad = jnp.zeros((d_model, npad), jnp.float32).at[:, :num_classes].set(w_out)
    b_out_pad = jnp.full((1, npad), -1e9, jnp.float32).at[:, :num_classes].set(b_out)

    return {
        "embedding": jax.random.normal(keys[0], (vocab_size, d_model), jnp.float32),
        "pos_embedding": jax.random.normal(keys[1], (num_positions, d_model), jnp.float32),
        # weight stacks in bf16 (MXU-native on v5e/v6e/v7x, half the DMA bytes);
        # biases / layernorm params stay f32.
        "wqkv": jnp.stack(wqkv_l).astype(jnp.bfloat16),
        "bqkv": jnp.stack(bqkv_l),
        "w1": jnp.stack(w1_l).astype(jnp.bfloat16), "b1": jnp.stack(b1_l),
        "w2": jnp.stack(w2_l).astype(jnp.bfloat16), "b2": jnp.stack(b2_l),
        "ln": jnp.stack(ln_l),
        "w_out_pad": w_out_pad.astype(jnp.bfloat16), "b_out_pad": b_out_pad,
    }


# ----------------------------------------------------------------------------
# Pure-JAX reference (mirrors the PyTorch module; uses the same bf16 weight
# casts as the kernel so the comparison is tight) for correctness checking.
# ----------------------------------------------------------------------------
def _layer_norm(h, g, b, eps=1e-5):
    mu = jnp.mean(h, axis=-1, keepdims=True)
    var = jnp.mean((h - mu) ** 2, axis=-1, keepdims=True)
    return (h - mu) * jax.lax.rsqrt(var + eps) * g + b


def reference_forward(indices, params, num_layers, num_classes, d_model):
    x = jnp.take(params["embedding"], indices, axis=0) + \
        params["pos_embedding"][:indices.shape[0]]
    attn_maps = []
    for l in range(num_layers):
        qkv = jnp.dot(x.astype(jnp.bfloat16), params["wqkv"][l],
                      preferred_element_type=jnp.float32) + params["bqkv"][l]
        q, k, v = qkv[:, :d_model], qkv[:, d_model:2 * d_model], qkv[:, 2 * d_model:]
        w = jax.nn.softmax((q @ k.T) / math.sqrt(d_model), axis=-1)
        h1 = _layer_norm(w @ v + x, params["ln"][l][0], params["ln"][l][1])
        ff = jnp.maximum(jnp.dot(h1.astype(jnp.bfloat16), params["w1"][l],
                                 preferred_element_type=jnp.float32) + params["b1"][l], 0.0)
        ff = jnp.dot(ff.astype(jnp.bfloat16), params["w2"][l],
                     preferred_element_type=jnp.float32) + params["b2"][l]
        x = _layer_norm(ff + h1, params["ln"][l][2], params["ln"][l][3])
        attn_maps.append(x)
    logits = jnp.dot(x.astype(jnp.bfloat16), params["w_out_pad"][:, :num_classes],
                     preferred_element_type=jnp.float32) + params["b_out_pad"][:, :num_classes]
    return jax.nn.log_softmax(logits, axis=-1), attn_maps


# ----------------------------------------------------------------------------
if __name__ == "__main__":
    # small shapes consistent with the module docstring (seq=20, 3 classes)
    vocab_size = 10
    num_positions = 20
    d_model = 32
    d_internal = 16
    num_classes = 3
    num_layers = 2
    seq_len = 20
    batch = 4          # batched sequences per pallas_call (parallel grid axis)
    npad = 128

    key = jax.random.PRNGKey(0)
    pkey, ikey = jax.random.split(key)
    params = init_transformer_params(pkey, vocab_size, num_positions, d_model,
                                     d_internal, num_classes, num_layers, npad)
    indices = jax.random.randint(ikey, (batch, seq_len), 0, vocab_size, dtype=jnp.int32)

    forward = make_transformer_forward(batch, seq_len, d_model, d_internal,
                                       num_classes, num_layers, npad)
    log_probs, layer_outs = forward(indices, params)
    jax.block_until_ready((log_probs, layer_outs))

    # shape / normalization checks
    assert log_probs.shape == (batch, seq_len, num_classes)
    assert layer_outs.shape == (batch, num_layers, seq_len, d_model)
    assert jnp.allclose(jnp.sum(jnp.exp(log_probs), axis=-1), 1.0, atol=1e-4)

    # numerical check against the pure-JAX reference, per sequence
    for b in range(batch):
        ref_lp, ref_maps = reference_forward(indices[b], params, num_layers,
                                             num_classes, d_model)
        assert jnp.allclose(log_probs[b], ref_lp, atol=1e-2, rtol=1e-2)
        for li in range(num_layers):
            assert jnp.allclose(layer_outs[b, li], ref_maps[li], atol=1e-2, rtol=1e-2)

    # module-style outputs for a single sequence: (20x3 log-probs, list of layer maps)
    module_log_probs = log_probs[0]
    module_attn_maps = [layer_outs[0, li] for li in range(num_layers)]
    assert module_log_probs.shape == (seq_len, num_classes)
    assert len(module_attn_maps) == num_layers
    assert all(m.shape == (seq_len, d_model) for m in module_attn_maps)

    print("KERNEL_OK")
</pallas_src>

<mosaic_0001>
module attributes {stable_mosaic.version = 11 : i64} {
  func.func @fused_transformer_kernel(%arg0: i32, %arg1: i32, %arg2: memref<1x20x32xf32, #tpu.memory_space<vmem>>, %arg3: memref<1x32x96xbf16, #tpu.memory_space<vmem>>, %arg4: memref<1x1x96xf32, #tpu.memory_space<vmem>>, %arg5: memref<1x32x16xbf16, #tpu.memory_space<vmem>>, %arg6: memref<1x1x16xf32, #tpu.memory_space<vmem>>, %arg7: memref<1x16x32xbf16, #tpu.memory_space<vmem>>, %arg8: memref<1x1x32xf32, #tpu.memory_space<vmem>>, %arg9: memref<1x4x32xf32, #tpu.memory_space<vmem>>, %arg10: memref<32x128xbf16, #tpu.memory_space<vmem>>, %arg11: memref<1x128xf32, #tpu.memory_space<vmem>>, %arg12: memref<1x1x20x32xf32, #tpu.memory_space<vmem>>, %arg13: memref<1x20x128xf32, #tpu.memory_space<vmem>>, %arg14: memref<20x32xf32, #tpu.memory_space<vmem>>) attributes {dimension_semantics = [#tpu.dimension_semantics<parallel>, #tpu.dimension_semantics<arbitrary>], iteration_bounds = array<i64: 4, 2>, scalar_prefetch = 0 : i64, scratch_operands = 1 : i64, tpu.core_type = #tpu.core_type<tc>, window_params = [{transform_indices = @transform_0, window_bounds = array<i64: 1, 20, 32>}, {transform_indices = @transform_1, window_bounds = array<i64: 1, 32, 96>}, {transform_indices = @transform_2, window_bounds = array<i64: 1, 1, 96>}, {transform_indices = @transform_3, window_bounds = array<i64: 1, 32, 16>}, {transform_indices = @transform_4, window_bounds = array<i64: 1, 1, 16>}, {transform_indices = @transform_5, window_bounds = array<i64: 1, 16, 32>}, {transform_indices = @transform_6, window_bounds = array<i64: 1, 1, 32>}, {transform_indices = @transform_7, window_bounds = array<i64: 1, 4, 32>}, {pipeline_mode = #tpu.pipeline_mode<synchronous>, transform_indices = @transform_8, window_bounds = array<i64: 32, 128>}, {pipeline_mode = #tpu.pipeline_mode<synchronous>, transform_indices = @transform_9, window_bounds = array<i64: 1, 128>}, {transform_indices = @transform_10, window_bounds = array<i64: 1, 1, 20, 32>}, {transform_indices = @transform_11, window_bounds = array<i64: 1, 20, 128>}]} {
    %c0_i32 = arith.constant 0 : i32
    %0 = arith.cmpi eq, %arg1, %c0_i32 : i32
    %1 = arith.extui %0 : i1 to i32
    %c0_i32_0 = arith.constant 0 : i32
    %2 = arith.cmpi ne, %1, %c0_i32_0 : i32
    scf.if %2 {
      %c0_48 = arith.constant 0 : index
      %c0_49 = arith.constant 0 : index
      %c0_50 = arith.constant 0 : index
      %106 = vector.load %arg2[%c0_48, %c0_49, %c0_50] : memref<1x20x32xf32, #tpu.memory_space<vmem>>, vector<1x20x32xf32>
      %107 = vector.shape_cast %106 : vector<1x20x32xf32> to vector<20x32xf32>
      %c0_51 = arith.constant 0 : index
      %c0_52 = arith.constant 0 : index
      %108 = vector.load %arg14[%c0_51, %c0_52] : memref<20x32xf32, #tpu.memory_space<vmem>>, vector<20x32xf32>
      tpu.vector_store %arg14[%c0_51, %c0_52], %107 {strides = array<i32>} : memref<20x32xf32, #tpu.memory_space<vmem>>, vector<20x32xf32>,
    } else {
    }
    %c0 = arith.constant 0 : index
    %c0_1 = arith.constant 0 : index
    %3 = vector.load %arg14[%c0, %c0_1] : memref<20x32xf32, #tpu.memory_space<vmem>>, vector<20x32xf32>
    %4 = arith.truncf %3 : vector<20x32xf32> to vector<20x32xbf16>
    %c0_2 = arith.constant 0 : index
    %c0_3 = arith.constant 0 : index
    %c0_4 = arith.constant 0 : index
    %5 = vector.load %arg3[%c0_2, %c0_3, %c0_4] : memref<1x32x96xbf16, #tpu.memory_space<vmem>>, vector<1x32x96xbf16>
    %6 = vector.shape_cast %5 : vector<1x32x96xbf16> to vector<32x96xbf16>
    %cst = arith.constant dense<0.000000e+00> : vector<20x96xf32>
    %7 = tpu.matmul %4, %6, %cst {dimension_numbers = #tpu.dot_dimension_numbers<[1], [0], [0], [1], [0, 0, 1, 1], [], []>} : vector<20x32xbf16>, vector<32x96xbf16>, vector<20x96xf32> -> vector<20x96xf32>
    %c0_5 = arith.constant 0 : index
    %c0_6 = arith.constant 0 : index
    %c0_7 = arith.constant 0 : index
    %8 = vector.load %arg4[%c0_5, %c0_6, %c0_7] : memref<1x1x96xf32, #tpu.memory_space<vmem>>, vector<1x1x96xf32>
    %9 = vector.shape_cast %8 : vector<1x1x96xf32> to vector<1x96xf32>
    %10 = vector.broadcast %9 : vector<1x96xf32> to vector<20x96xf32>
    %11 = arith.addf %7, %10 : vector<20x96xf32>
    %12 = vector.extract_strided_slice %11 {offsets = [0, 0], sizes = [20, 32], strides = [1, 1]} : vector<20x96xf32> to vector<20x32xf32>
    %13 = vector.extract_strided_slice %11 {offsets = [0, 32], sizes = [20, 32], strides = [1, 1]} : vector<20x96xf32> to vector<20x32xf32>
    %14 = vector.extract_strided_slice %11 {offsets = [0, 64], sizes = [20, 32], strides = [1, 1]} : vector<20x96xf32> to vector<20x32xf32>
    %cst_8 = arith.constant dense<0.000000e+00> : vector<20x20xf32>
    %15 = tpu.matmul %12, %13, %cst_8 {dimension_numbers = #tpu.dot_dimension_numbers<[1], [1], [0], [0], [0, 0, 1, 0], [], []>} : vector<20x32xf32>, vector<20x32xf32>, vector<20x20xf32> -> vector<20x20xf32>
    %cst_9 = arith.constant 0.176776692 : f32
    %16 = vector.broadcast %cst_9 : f32 to vector<20x20xf32>
    %17 = arith.mulf %15, %16 : vector<20x20xf32>
    %cst_10 = arith.constant dense<0xFF800000> : vector<20xf32>
    %18 = vector.multi_reduction <maximumf>, %17, %cst_10 [1] : vector<20x20xf32> to vector<20xf32>
    %19 = vector.shape_cast %18 : vector<20xf32> to vector<20x1xf32>
    %20 = vector.broadcast %19 : vector<20x1xf32> to vector<20x20xf32>
    %21 = arith.subf %17, %20 : vector<20x20xf32>
    %22 = math.exp %21 : vector<20x20xf32>
    %cst_11 = arith.constant dense<0.000000e+00> : vector<20xf32>
    %23 = vector.multi_reduction <add>, %22, %cst_11 [1] : vector<20x20xf32> to vector<20xf32>
    %24 = vector.shape_cast %23 : vector<20xf32> to vector<20x1xf32>
    %25 = tpu.reciprocal %24 : vector<20x1xf32> -> vector<20x1xf32>
    %26 = vector.broadcast %25 : vector<20x1xf32> to vector<20x20xf32>
    %27 = arith.mulf %22, %26 : vector<20x20xf32>
    %cst_12 = arith.constant dense<0.000000e+00> : vector<20x32xf32>
    %28 = tpu.matmul %27, %14, %cst_12 {dimension_numbers = #tpu.dot_dimension_numbers<[1], [0], [0], [1], [0, 0, 1, 1], [], []>} : vector<20x20xf32>, vector<20x32xf32>, vector<20x32xf32> -> vector<20x32xf32>
    %c0_13 = arith.constant 0 : index
    %c0_14 = arith.constant 0 : index
    %c0_15 = arith.constant 0 : index
    %29 = vector.load %arg9[%c0_13, %c0_14, %c0_15] : memref<1x4x32xf32, #tpu.memory_space<vmem>>, vector<1x4x32xf32>
    %30 = vector.shape_cast %29 : vector<1x4x32xf32> to vector<4x32xf32>
    %31 = vector.extract_strided_slice %30 {offsets = [0, 0], sizes = [1, 32], strides = [1, 1]} : vector<4x32xf32> to vector<1x32xf32>
    %32 = vector.extract_strided_slice %30 {offsets = [1, 0], sizes = [1, 32], strides = [1, 1]} : vector<4x32xf32> to vector<1x32xf32>
    %33 = vector.extract_strided_slice %30 {offsets = [2, 0], sizes = [1, 32], strides = [1, 1]} : vector<4x32xf32> to vector<1x32xf32>
    %34 = vector.extract_strided_slice %30 {offsets = [3, 0], sizes = [1, 32], strides = [1, 1]} : vector<4x32xf32> to vector<1x32xf32>
    %35 = arith.addf %28, %3 : vector<20x32xf32>
    %cst_16 = arith.constant dense<0.000000e+00> : vector<20xf32>
    %36 = vector.multi_reduction <add>, %35, %cst_16 [1] : vector<20x32xf32> to vector<20xf32>
    %37 = vector.shape_cast %36 : vector<20xf32> to vector<20x1xf32>
    %cst_17 = arith.constant 3.200000e+01 : f32
    %38 = vector.broadcast %cst_17 : f32 to vector<20x1xf32>
    %39 = arith.divf %37, %38 : vector<20x1xf32>
    %40 = arith.mulf %35, %35 : vector<20x32xf32>
    %cst_18 = arith.constant dense<0.000000e+00> : vector<20xf32>
    %41 = vector.multi_reduction <add>, %40, %cst_18 [1] : vector<20x32xf32> to vector<20xf32>
    %42 = vector.shape_cast %41 : vector<20xf32> to vector<20x1xf32>
    %cst_19 = arith.constant 3.200000e+01 : f32
    %43 = vector.broadcast %cst_19 : f32 to vector<20x1xf32>
    %44 = arith.divf %42, %43 : vector<20x1xf32>
    %45 = vector.broadcast %39 : vector<20x1xf32> to vector<20x32xf32>
    %46 = arith.subf %35, %45 : vector<20x32xf32>
    %47 = arith.mulf %39, %39 : vector<20x1xf32>
    %48 = arith.subf %44, %47 : vector<20x1xf32>
    %cst_20 = arith.constant 9.99999974E-6 : f32
    %49 = vector.broadcast %cst_20 : f32 to vector<20x1xf32>
    %50 = arith.addf %48, %49 : vector<20x1xf32>
    %51 = math.rsqrt %50 : vector<20x1xf32>
    %52 = vector.broadcast %51 : vector<20x1xf32> to vector<20x32xf32>
    %53 = arith.mulf %46, %52 : vector<20x32xf32>
    %54 = vector.broadcast %31 : vector<1x32xf32> to vector<20x32xf32>
    %55 = arith.mulf %53, %54 : vector<20x32xf32>
    %56 = vector.broadcast %32 : vector<1x32xf32> to vector<20x32xf32>
    %57 = arith.addf %55, %56 : vector<20x32xf32>
    %58 = arith.truncf %57 : vector<20x32xf32> to vector<20x32xbf16>
    %c0_21 = arith.constant 0 : index
    %c0_22 = arith.constant 0 : index
    %c0_23 = arith.constant 0 : index
    %59 = vector.load %arg5[%c0_21, %c0_22, %c0_23] : memref<1x32x16xbf16, #tpu.memory_space<vmem>>, vector<1x32x16xbf16>
    %60 = vector.shape_cast %59 : vector<1x32x16xbf16> to vector<32x16xbf16>
    %cst_24 = arith.constant dense<0.000000e+00> : vector<20x16xf32>
    %61 = tpu.matmul %58, %60, %cst_24 {dimension_numbers = #tpu.dot_dimension_numbers<[1], [0], [0], [1], [0, 0, 1, 1], [], []>} : vector<20x32xbf16>, vector<32x16xbf16>, vector<20x16xf32> -> vector<20x16xf32>
    %c0_25 = arith.constant 0 : index
    %c0_26 = arith.constant 0 : index
    %c0_27 = arith.constant 0 : index
    %62 = vector.load %arg6[%c0_25, %c0_26, %c0_27] : memref<1x1x16xf32, #tpu.memory_space<vmem>>, vector<1x1x16xf32>
    %63 = vector.shape_cast %62 : vector<1x1x16xf32> to vector<1x16xf32>
    %64 = vector.broadcast %63 : vector<1x16xf32> to vector<20x16xf32>
    %65 = arith.addf %61, %64 : vector<20x16xf32>
    %cst_28 = arith.constant 0.000000e+00 : f32
    %66 = vector.broadcast %cst_28 : f32 to vector<20x16xf32>
    %67 = arith.maximumf %65, %66 : vector<20x16xf32>
    %68 = arith.truncf %67 : vector<20x16xf32> to vector<20x16xbf16>
    %c0_29 = arith.constant 0 : index
    %c0_30 = arith.constant 0 : index
    %c0_31 = arith.constant 0 : index
    %69 = vector.load %arg7[%c0_29, %c0_30, %c0_31] : memref<1x16x32xbf16, #tpu.memory_space<vmem>>, vector<1x16x32xbf16>
    %70 = vector.shape_cast %69 : vector<1x16x32xbf16> to vector<16x32xbf16>
    %cst_32 = arith.constant dense<0.000000e+00> : vector<20x32xf32>
    %71 = tpu.matmul %68, %70, %cst_32 {dimension_numbers = #tpu.dot_dimension_numbers<[1], [0], [0], [1], [0, 0, 1, 1], [], []>} : vector<20x16xbf16>, vector<16x32xbf16>, vector<20x32xf32> -> vector<20x32xf32>
    %c0_33 = arith.constant 0 : index
    %c0_34 = arith.constant 0 : index
    %c0_35 = arith.constant 0 : index
    %72 = vector.load %arg8[%c0_33, %c0_34, %c0_35] : memref<1x1x32xf32, #tpu.memory_space<vmem>>, vector<1x1x32xf32>
    %73 = vector.shape_cast %72 : vector<1x1x32xf32> to vector<1x32xf32>
    %74 = vector.broadcast %73 : vector<1x32xf32> to vector<20x32xf32>
    %75 = arith.addf %71, %74 : vector<20x32xf32>
    %76 = arith.addf %75, %57 : vector<20x32xf32>
    %cst_36 = arith.constant dense<0.000000e+00> : vector<20xf32>
    %77 = vector.multi_reduction <add>, %76, %cst_36 [1] : vector<20x32xf32> to vector<20xf32>
    %78 = vector.shape_cast %77 : vector<20xf32> to vector<20x1xf32>
    %cst_37 = arith.constant 3.200000e+01 : f32
    %79 = vector.broadcast %cst_37 : f32 to vector<20x1xf32>
    %80 = arith.divf %78, %79 : vector<20x1xf32>
    %81 = arith.mulf %76, %76 : vector<20x32xf32>
    %cst_38 = arith.constant dense<0.000000e+00> : vector<20xf32>
    %82 = vector.multi_reduction <add>, %81, %cst_38 [1] : vector<20x32xf32> to vector<20xf32>
    %83 = vector.shape_cast %82 : vector<20xf32> to vector<20x1xf32>
    %cst_39 = arith.constant 3.200000e+01 : f32
    %84 = vector.broadcast %cst_39 : f32 to vector<20x1xf32>
    %85 = arith.divf %83, %84 : vector<20x1xf32>
    %86 = vector.broadcast %80 : vector<20x1xf32> to vector<20x32xf32>
    %87 = arith.subf %76, %86 : vector<20x32xf32>
    %88 = arith.mulf %80, %80 : vector<20x1xf32>
    %89 = arith.subf %85, %88 : vector<20x1xf32>
    %cst_40 = arith.constant 9.99999974E-6 : f32
    %90 = vector.broadcast %cst_40 : f32 to vector<20x1xf32>
    %91 = arith.addf %89, %90 : vector<20x1xf32>
    %92 = math.rsqrt %91 : vector<20x1xf32>
    %93 = vector.broadcast %92 : vector<20x1xf32> to vector<20x32xf32>
    %94 = arith.mulf %87, %93 : vector<20x32xf32>
    %95 = vector.broadcast %33 : vector<1x32xf32> to vector<20x32xf32>
    %96 = arith.mulf %94, %95 : vector<20x32xf32>
    %97 = vector.broadcast %34 : vector<1x32xf32> to vector<20x32xf32>
    %98 = arith.addf %96, %97 : vector<20x32xf32>
    %c0_41 = arith.constant 0 : index
    %c0_42 = arith.constant 0 : index
    %99 = vector.load %arg14[%c0_41, %c0_42] : memref<20x32xf32, #tpu.memory_space<vmem>>, vector<20x32xf32>
    tpu.vector_store %arg14[%c0_41, %c0_42], %98 {strides = array<i32>} : memref<20x32xf32, #tpu.memory_space<vmem>>, vector<20x32xf32>,
    %c0_43 = arith.constant 0 : index
    %c0_44 = arith.constant 0 : index
    %c0_45 = arith.constant 0 : index
    %c0_46 = arith.constant 0 : index
    %100 = vector.load %arg12[%c0_43, %c0_44, %c0_45, %c0_46] : memref<1x1x20x32xf32, #tpu.memory_space<vmem>>, vector<1x1x20x32xf32>
    %101 = vector.shape_cast %100 : vector<1x1x20x32xf32> to vector<20x32xf32>
    %102 = vector.shape_cast %98 : vector<20x32xf32> to vector<1x1x20x32xf32>
    tpu.vector_store %arg12[%c0_43, %c0_44, %c0_45, %c0_46], %102 {strides = array<i32>} : memref<1x1x20x32xf32, #tpu.memory_space<vmem>>, vector<1x1x20x32xf32>,
    %c1_i32 = arith.constant 1 : i32
    %103 = arith.cmpi eq, %arg1, %c1_i32 : i32
    %104 = arith.extui %103 : i1 to i32
    %c0_i32_47 = arith.constant 0 : i32
    %105 = arith.cmpi ne, %104, %c0_i32_47 : i32
    scf.if %105 {
      %106 = arith.truncf %98 : vector<20x32xf32> to vector<20x32xbf16>
      %c0_48 = arith.constant 0 : index
      %c0_49 = arith.constant 0 : index
      %107 = vector.load %arg10[%c0_48, %c0_49] : memref<32x128xbf16, #tpu.memory_space<vmem>>, vector<32x128xbf16>
      %cst_50 = arith.constant dense<0.000000e+00> : vector<20x128xf32>
      %108 = tpu.matmul %106, %107, %cst_50 {dimension_numbers = #tpu.dot_dimension_numbers<[1], [0], [0], [1], [0, 0, 1, 1], [], []>} : vector<20x32xbf16>, vector<32x128xbf16>, vector<20x128xf32> -> vector<20x128xf32>
      %c0_51 = arith.constant 0 : index
      %c0_52 = arith.constant 0 : index
      %109 = vector.load %arg11[%c0_51, %c0_52] : memref<1x128xf32, #tpu.memory_space<vmem>>, vector<1x128xf32>
      %110 = vector.broadcast %109 : vector<1x128xf32> to vector<20x128xf32>
      %111 = arith.addf %108, %110 : vector<20x128xf32>
      %cst_53 = arith.constant dense<0xFF800000> : vector<20xf32>
      %112 = vector.multi_reduction <maximumf>, %111, %cst_53 [1] : vector<20x128xf32> to vector<20xf32>
      %113 = vector.shape_cast %112 : vector<20xf32> to vector<20x1xf32>
      %114 = vector.broadcast %113 : vector<20x1xf32> to vector<20x128xf32>
      %115 = arith.subf %111, %114 : vector<20x128xf32>
      %116 = math.exp %115 : vector<20x128xf32>
      %cst_54 = arith.constant dense<0.000000e+00> : vector<20xf32>
      %117 = vector.multi_reduction <add>, %116, %cst_54 [1] : vector<20x128xf32> to vector<20xf32>
      %118 = vector.shape_cast %117 : vector<20xf32> to vector<20x1xf32>
      %119 = math.log %118 : vector<20x1xf32>
      %120 = vector.broadcast %119 : vector<20x1xf32> to vector<20x128xf32>
      %121 = arith.subf %115, %120 : vector<20x128xf32>
      %c0_55 = arith.constant 0 : index
      %c0_56 = arith.constant 0 : index
      %c0_57 = arith.constant 0 : index
      %122 = vector.load %arg13[%c0_55, %c0_56, %c0_57] : memref<1x20x128xf32, #tpu.memory_space<vmem>>, vector<1x20x128xf32>
      %123 = vector.shape_cast %122 : vector<1x20x128xf32> to vector<20x128xf32>
      %124 = vector.shape_cast %121 : vector<20x128xf32> to vector<1x20x128xf32>
      tpu.vector_store %arg13[%c0_55, %c0_56, %c0_57], %124 {strides = array<i32>} : memref<1x20x128xf32, #tpu.memory_space<vmem>>, vector<1x20x128xf32>,
    } else {
    }
    return
  }
  func.func @transform_0(%arg0: i32, %arg1: i32) -> (i32, i32, i32) {
    %c0_i32 = arith.constant 0 : i32
    %c0_i32_0 = arith.constant 0 : i32
    %c0_i32_1 = arith.constant 0 : i32
    return %arg0, %c0_i32, %c0_i32_0 : i32, i32, i32
  }
  func.func @transform_1(%arg0: i32, %arg1: i32) -> (i32, i32, i32) {
    %c0_i32 = arith.constant 0 : i32
    %c0_i32_0 = arith.constant 0 : i32
    %c0_i32_1 = arith.constant 0 : i32
    return %arg1, %c0_i32, %c0_i32_0 : i32, i32, i32
  }
  func.func @transform_2(%arg0: i32, %arg1: i32) -> (i32, i32, i32) {
    %c0_i32 = arith.constant 0 : i32
    %c0_i32_0 = arith.constant 0 : i32
    %c0_i32_1 = arith.constant 0 : i32
    return %arg1, %c0_i32, %c0_i32_0 : i32, i32, i32
  }
  func.func @transform_3(%arg0: i32, %arg1: i32) -> (i32, i32, i32) {
    %c0_i32 = arith.constant 0 : i32
    %c0_i32_0 = arith.constant 0 : i32
    %c0_i32_1 = arith.constant 0 : i32
    return %arg1, %c0_i32, %c0_i32_0 : i32, i32, i32
  }
  func.func @transform_4(%arg0: i32, %arg1: i32) -> (i32, i32, i32) {
    %c0_i32 = arith.constant 0 : i32
    %c0_i32_0 = arith.constant 0 : i32
    %c0_i32_1 = arith.constant 0 : i32
    return %arg1, %c0_i32, %c0_i32_0 : i32, i32, i32
  }
  func.func @transform_5(%arg0: i32, %arg1: i32) -> (i32, i32, i32) {
    %c0_i32 = arith.constant 0 : i32
    %c0_i32_0 = arith.constant 0 : i32
    %c0_i32_1 = arith.constant 0 : i32
    return %arg1, %c0_i32, %c0_i32_0 : i32, i32, i32
  }
  func.func @transform_6(%arg0: i32, %arg1: i32) -> (i32, i32, i32) {
    %c0_i32 = arith.constant 0 : i32
    %c0_i32_0 = arith.constant 0 : i32
    %c0_i32_1 = arith.constant 0 : i32
    return %arg1, %c0_i32, %c0_i32_0 : i32, i32, i32
  }
  func.func @transform_7(%arg0: i32, %arg1: i32) -> (i32, i32, i32) {
    %c0_i32 = arith.constant 0 : i32
    %c0_i32_0 = arith.constant 0 : i32
    %c0_i32_1 = arith.constant 0 : i32
    return %arg1, %c0_i32, %c0_i32_0 : i32, i32, i32
  }
  func.func @transform_8(%arg0: i32, %arg1: i32) -> (i32, i32) {
    %c0_i32 = arith.constant 0 : i32
    %c0_i32_0 = arith.constant 0 : i32
    %c0_i32_1 = arith.constant 0 : i32
    return %c0_i32, %c0_i32_0 : i32, i32
  }
  func.func @transform_9(%arg0: i32, %arg1: i32) -> (i32, i32) {
    %c0_i32 = arith.constant 0 : i32
    %c0_i32_0 = arith.constant 0 : i32
    %c0_i32_1 = arith.constant 0 : i32
    return %c0_i32, %c0_i32_0 : i32, i32
  }
  func.func @transform_10(%arg0: i32, %arg1: i32) -> (i32, i32, i32, i32) {
    %c0_i32 = arith.constant 0 : i32
    %c0_i32_0 = arith.constant 0 : i32
    %c0_i32_1 = arith.constant 0 : i32
    return %arg0, %arg1, %c0_i32, %c0_i32_0 : i32, i32, i32, i32
  }
  func.func @transform_11(%arg0: i32, %arg1: i32) -> (i32, i32, i32) {
    %c0_i32 = arith.constant 0 : i32
    %c0_i32_0 = arith.constant 0 : i32
    %c0_i32_1 = arith.constant 0 : i32
    return %arg0, %c0_i32, %c0_i32_0 : i32, i32, i32
  }
}

</mosaic_0001>

<llo_original>
// kernel: forward.1
$region0: #{forward.1}
  #allocation0 [shape = 'u32[]', space=smem, size = 0x4, offset = 0x4, fixed_abs, tag = 'smem constant byte address 0x4 - core index']
  #allocation1 [shape = 'u32[144,128]{1,0:T(1,128)}', space=vmem, size = 0x12000, scoped, tag = 'internal scratch']
  #allocation2 [shape = 'f32[20,32]{1,0:T(8,128)}', space=vmem, size = 0x3000, scoped, tag = 'scratch operand']
  %s0 = inlined_call_operand.vmem [shape: f32[4,20,32], index: 0, kind: input, shape index: {}]
  %s1 = inlined_call_operand.vmem [shape: bf16[2,32,96], index: 1, kind: input, shape index: {}]
  %s2 = inlined_call_operand.vmem [shape: f32[2,1,96], index: 2, kind: input, shape index: {}]
  %s3 = inlined_call_operand.vmem [shape: bf16[2,32,16], index: 3, kind: input, shape index: {}]
  %s4 = inlined_call_operand.vmem [shape: f32[2,1,16], index: 4, kind: input, shape index: {}]
  %s5 = inlined_call_operand.vmem [shape: bf16[2,16,32], index: 5, kind: input, shape index: {}]
  %s6 = inlined_call_operand.vmem [shape: f32[2,1,32], index: 6, kind: input, shape index: {}]
  %s7 = inlined_call_operand.vmem [shape: f32[2,4,32], index: 7, kind: input, shape index: {}]
  %s8 = inlined_call_operand.vmem [shape: bf16[32,128], index: 8, kind: input, shape index: {}]
  %s9 = inlined_call_operand.vmem [shape: f32[1,128], index: 9, kind: input, shape index: {}]
  %s10 = inlined_call_operand.vmem [shape: f32[4,2,20,32], index: 10, kind: output, shape index: {0}]
  %s11 = inlined_call_operand.vmem [shape: f32[4,20,128], index: 11, kind: output, shape index: {1}]
  %12 = xla_tuple %s10, %s11
  %s13 = sld [smem:[#allocation0]]
  $region89: #{forward.1} parent=0
    _
  %s15 = ssub.s32 1, %s13
  %s16 = scalar_select 0, %s15, %s13
  loop: start=0, step=1, limit=10
  $region2: #{forward.1} parent=0 // loop_pre_header
    _
  $region3: #{forward.1} parent=0 // loop_header
    %s18 = sphi 0, %s22
    %p19 = scmp.ge.s32.totalorder %s18, 10
    %s25 = sphi 0, %s37
    %s26 = sphi 0, %s33
    %s27 = sphi 0, %s25
    %s28 = sphi 0, %s26
    %s29 = sphi 0, %s27
    %s30 = sphi 0, %s28
    %s40 = sphi 0, %s42
    %s43 = sphi 0, %s40
    %s44 = sphi 0, %s43
    %s60 = sphi 0, %s44
    %s66 = sphi 0, %s68
    %s69 = sphi 0, %s66
    %s70 = sphi 0, %s69
    %s86 = sphi 0, %s70
    %s92 = sphi 0, %s94
    %s95 = sphi 0, %s92
    %s96 = sphi 0, %s95
    %s112 = sphi 0, %s96
    %s118 = sphi 0, %s120
    %s121 = sphi 0, %s118
    %s122 = sphi 0, %s121
    %s138 = sphi 0, %s122
    %s144 = sphi 0, %s146
    %s147 = sphi 0, %s144
    %s148 = sphi 0, %s147
    %s164 = sphi 0, %s148
    %s170 = sphi 0, %s172
    %s173 = sphi 0, %s170
    %s174 = sphi 0, %s173
    %s190 = sphi 0, %s174
    %s196 = sphi 0, %s198
    %s199 = sphi 0, %s196
    %s200 = sphi 0, %s199
    %s216 = sphi 0, %s200
    %s222 = sphi 0, %s224
    %s225 = sphi 0, %s222
    %s226 = sphi 0, %s225
    %s242 = sphi 0, %s226
    %s246 = sphi 0, %s246
    %s248 = sphi 0, %s246
    %s249 = sphi 0, %s248
    %s263 = sphi 0, %s249
    %s267 = sphi 0, %s267
    %s269 = sphi 0, %s267
    %s270 = sphi 0, %s269
    %s284 = sphi 0, %s270
    %s292 = sphi 0, %s294
    %s295 = sphi 0, %s292
    %s296 = sphi 0, %s295
    %s312 = sphi 0, %s296
    %s318 = sphi 0, %s320
    %s321 = sphi 0, %s318
    %s322 = sphi 0, %s321
    %s338 = sphi 0, %s322
  $region4: #{forward.1} parent=0 // loop_header_branch
    %21 = sbr.rel (%p19) target = $region8
  $region5: #{forward.1} parent=0 // loop_body
    %s23 = ssub.s32 %s18, 1
    %s24 = ssub.s32 %s18, 2
    %s31 = sadd.s32 1, %s26
    %p32 = scmp.ge.s32.totalorder %s31, 2
    %s33 = scalar_select %p32, 0, %s31
    %s34 = sadd.s32 1, %s25
    %s35 = scalar_select %p32, %s34, %s25
    %p36 = scmp.ge.s32.totalorder %s35, 4
    %s37 = scalar_select %p36, 0, %s35
    %s38 = ssub.s32 %s25, %s37
    %p39 = scmp.eq.s32.totalorder %s38, 0
    %s41 = sadd.s32 %s40, 1
    %s42 = scalar_select %p39, %s40, %s41
    %p45 = pneg %p39
    %p46 = scmp.eq.s32.totalorder %s18, 7
    %p47 = por %p45, %p46
    %p48 = scmp.ne.s32.totalorder %s40, %s43
    %p49 = scmp.eq.s32.totalorder %s18, 0
    %p50 = por %p48, %p49
    %p51 = scmp.ne.s32.totalorder %s40, %s43
    %p52 = scmp.eq.s32.totalorder %s23, 7
    %p53 = por %p51, %p52
    %p54 = scmp.ne.s32.totalorder %s43, %s44
    %p55 = scmp.eq.s32.totalorder %s23, 0
    %p56 = por %p54, %p55
    %p57 = scmp.ne.s32.totalorder %s43, %s44
    %p58 = scmp.eq.s32.totalorder %s24, 7
    %p59 = por %p57, %p58
    %p61 = scmp.ne.s32.totalorder %s44, %s60
    %p62 = scmp.eq.s32.totalorder %s24, 0
    %p63 = por %p61, %p62
    %s64 = ssub.s32 %s26, %s33
    %p65 = scmp.eq.s32.totalorder %s64, 0
    %s67 = sadd.s32 %s66, 1
    %s68 = scalar_select %p65, %s66, %s67
    %p71 = pneg %p65
    %p72 = scmp.eq.s32.totalorder %s18, 7
    %p73 = por %p71, %p72
    %p74 = scmp.ne.s32.totalorder %s66, %s69
    %p75 = scmp.eq.s32.totalorder %s18, 0
    %p76 = por %p74, %p75
    %p77 = scmp.ne.s32.totalorder %s66, %s69
    %p78 = scmp.eq.s32.totalorder %s23, 7
    %p79 = por %p77, %p78
    %p80 = scmp.ne.s32.totalorder %s69, %s70
    %p81 = scmp.eq.s32.totalorder %s23, 0
    %p82 = por %p80, %p81
    %p83 = scmp.ne.s32.totalorder %s69, %s70
    %p84 = scmp.eq.s32.totalorder %s24, 7
    %p85 = por %p83, %p84
    %p87 = scmp.ne.s32.totalorder %s70, %s86
    %p88 = scmp.eq.s32.totalorder %s24, 0
    %p89 = por %p87, %p88
    %s90 = ssub.s32 %s26, %s33
    %p91 = scmp.eq.s32.totalorder %s90, 0
    %s93 = sadd.s32 %s92, 1
    %s94 = scalar_select %p91, %s92, %s93
    %p97 = pneg %p91
    %p98 = scmp.eq.s32.totalorder %s18, 7
    %p99 = por %p97, %p98
    %p100 = scmp.ne.s32.totalorder %s92, %s95
    %p101 = scmp.eq.s32.totalorder %s18, 0
    %p102 = por %p100, %p101
    %p103 = scmp.ne.s32.totalorder %s92, %s95
    %p104 = scmp.eq.s32.totalorder %s23, 7
    %p105 = por %p103, %p104
    %p106 = scmp.ne.s32.totalorder %s95, %s96
    %p107 = scmp.eq.s32.totalorder %s23, 0
    %p108 = por %p106, %p107
    %p109 = scmp.ne.s32.totalorder %s95, %s96
    %p110 = scmp.eq.s32.totalorder %s24, 7
    %p111 = por %p109, %p110
    %p113 = scmp.ne.s32.totalorder %s96, %s112
    %p114 = scmp.eq.s32.totalorder %s24, 0
    %p115 = por %p113, %p114
    %s116 = ssub.s32 %s26, %s33
    %p117 = scmp.eq.s32.totalorder %s116, 0
    %s119 = sadd.s32 %s118, 1
    %s120 = scalar_select %p117, %s118, %s119
    %p123 = pneg %p117
    %p124 = scmp.eq.s32.totalorder %s18, 7
    %p125 = por %p123, %p124
    %p126 = scmp.ne.s32.totalorder %s118, %s121
    %p127 = scmp.eq.s32.totalorder %s18, 0
    %p128 = por %p126, %p127
    %p129 = scmp.ne.s32.totalorder %s118, %s121
    %p130 = scmp.eq.s32.totalorder %s23, 7
    %p131 = por %p129, %p130
    %p132 = scmp.ne.s32.totalorder %s121, %s122
    %p133 = scmp.eq.s32.totalorder %s23, 0
    %p134 = por %p132, %p133
    %p135 = scmp.ne.s32.totalorder %s121, %s122
    %p136 = scmp.eq.s32.totalorder %s24, 7
    %p137 = por %p135, %p136
    %p139 = scmp.ne.s32.totalorder %s122, %s138
    %p140 = scmp.eq.s32.totalorder %s24, 0
    %p141 = por %p139, %p140
    %s142 = ssub.s32 %s26, %s33
    %p143 = scmp.eq.s32.totalorder %s142, 0
    %s145 = sadd.s32 %s144, 1
    %s146 = scalar_select %p143, %s144, %s145
    %p149 = pneg %p143
    %p150 = scmp.eq.s32.totalorder %s18, 7
    %p151 = por %p149, %p150
    %p152 = scmp.ne.s32.totalorder %s144, %s147
    %p153 = scmp.eq.s32.totalorder %s18, 0
    %p154 = por %p152, %p153
    %p155 = scmp.ne.s32.totalorder %s144, %s147
    %p156 = scmp.eq.s32.totalorder %s23, 7
    %p157 = por %p155, %p156
    %p158 = scmp.ne.s32.totalorder %s147, %s148
    %p159 = scmp.eq.s32.totalorder %s23, 0
    %p160 = por %p158, %p159
    %p161 = scmp.ne.s32.totalorder %s147, %s148
    %p162 = scmp.eq.s32.totalorder %s24, 7
    %p163 = por %p161, %p162
    %p165 = scmp.ne.s32.totalorder %s148, %s164
    %p166 = scmp.eq.s32.totalorder %s24, 0
    %p167 = por %p165, %p166
    %s168 = ssub.s32 %s26, %s33
    %p169 = scmp.eq.s32.totalorder %s168, 0
    %s171 = sadd.s32 %s170, 1
    %s172 = scalar_select %p169, %s170, %s171
    %p175 = pneg %p169
    %p176 = scmp.eq.s32.totalorder %s18, 7
    %p177 = por %p175, %p176
    %p178 = scmp.ne.s32.totalorder %s170, %s173
    %p179 = scmp.eq.s32.totalorder %s18, 0
    %p180 = por %p178, %p179
    %p181 = scmp.ne.s32.totalorder %s170, %s173
    %p182 = scmp.eq.s32.totalorder %s23, 7
    %p183 = por %p181, %p182
    %p184 = scmp.ne.s32.totalorder %s173, %s174
    %p185 = scmp.eq.s32.totalorder %s23, 0
    %p186 = por %p184, %p185
    %p187 = scmp.ne.s32.totalorder %s173, %s174
    %p188 = scmp.eq.s32.totalorder %s24, 7
    %p189 = por %p187, %p188
    %p191 = scmp.ne.s32.totalorder %s174, %s190
    %p192 = scmp.eq.s32.totalorder %s24, 0
    %p193 = por %p191, %p192
    %s194 = ssub.s32 %s26, %s33
    %p195 = scmp.eq.s32.totalorder %s194, 0
    %s197 = sadd.s32 %s196, 1
    %s198 = scalar_select %p195, %s196, %s197
    %p201 = pneg %p195
    %p202 = scmp.eq.s32.totalorder %s18, 7
    %p203 = por %p201, %p202
    %p204 = scmp.ne.s32.totalorder %s196, %s199
    %p205 = scmp.eq.s32.totalorder %s18, 0
    %p206 = por %p204, %p205
    %p207 = scmp.ne.s32.totalorder %s196, %s199
    %p208 = scmp.eq.s32.totalorder %s23, 7
    %p209 = por %p207, %p208
    %p210 = scmp.ne.s32.totalorder %s199, %s200
    %p211 = scmp.eq.s32.totalorder %s23, 0
    %p212 = por %p210, %p211
    %p213 = scmp.ne.s32.totalorder %s199, %s200
    %p214 = scmp.eq.s32.totalorder %s24, 7
    %p215 = por %p213, %p214
    %p217 = scmp.ne.s32.totalorder %s200, %s216
    %p218 = scmp.eq.s32.totalorder %s24, 0
    %p219 = por %p217, %p218
    %s220 = ssub.s32 %s26, %s33
    %p221 = scmp.eq.s32.totalorder %s220, 0
    %s223 = sadd.s32 %s222, 1
    %s224 = scalar_select %p221, %s222, %s223
    %p227 = pneg %p221
    %p228 = scmp.eq.s32.totalorder %s18, 7
    %p229 = por %p227, %p228
    %p230 = scmp.ne.s32.totalorder %s222, %s225
    %p231 = scmp.eq.s32.totalorder %s18, 0
    %p232 = por %p230, %p231
    %p233 = scmp.ne.s32.totalorder %s222, %s225
    %p234 = scmp.eq.s32.totalorder %s23, 7
    %p235 = por %p233, %p234
    %p236 = scmp.ne.s32.totalorder %s225, %s226
    %p237 = scmp.eq.s32.totalorder %s23, 0
    %p238 = por %p236, %p237
    %p239 = scmp.ne.s32.totalorder %s225, %s226
    %p240 = scmp.eq.s32.totalorder %s24, 7
    %p241 = por %p239, %p240
    %p243 = scmp.ne.s32.totalorder %s226, %s242
    %p244 = scmp.eq.s32.totalorder %s24, 0
    %p245 = por %p243, %p244
    %s247 = sadd.s32 %s246, 1
    %p250 = scmp.eq.s32.totalorder %s18, 7
    %p251 = scmp.ne.s32.totalorder %s246, %s248
    %p252 = scmp.eq.s32.totalorder %s18, 0
    %p253 = por %p251, %p252
    %p254 = scmp.ne.s32.totalorder %s246, %s248
    %p255 = scmp.eq.s32.totalorder %s23, 7
    %p256 = por %p254, %p255
    %p257 = scmp.ne.s32.totalorder %s248, %s249
    %p258 = scmp.eq.s32.totalorder %s23, 0
    %p259 = por %p257, %p258
    %p260 = scmp.ne.s32.totalorder %s248, %s249
    %p261 = scmp.eq.s32.totalorder %s24, 7
    %p262 = por %p260, %p261
    %p264 = scmp.ne.s32.totalorder %s249, %s263
    %p265 = scmp.eq.s32.totalorder %s24, 0
    %p266 = por %p264, %p265
    %s268 = sadd.s32 %s267, 1
    %p271 = scmp.eq.s32.totalorder %s18, 7
    %p272 = scmp.ne.s32.totalorder %s267, %s269
    %p273 = scmp.eq.s32.totalorder %s18, 0
    %p274 = por %p272, %p273
    %p275 = scmp.ne.s32.totalorder %s267, %s269
    %p276 = scmp.eq.s32.totalorder %s23, 7
    %p277 = por %p275, %p276
    %p278 = scmp.ne.s32.totalorder %s269, %s270
    %p279 = scmp.eq.s32.totalorder %s23, 0
    %p280 = por %p278, %p279
    %p281 = scmp.ne.s32.totalorder %s269, %s270
    %p282 = scmp.eq.s32.totalorder %s24, 7
    %p283 = por %p281, %p282
    %p285 = scmp.ne.s32.totalorder %s270, %s284
    %p286 = scmp.eq.s32.totalorder %s24, 0
    %p287 = por %p285, %p286
    %s288 = ssub.s32 %s25, %s37
    %s289 = ssub.s32 %s26, %s33
    %s290 = sor.u32 %s288, %s289
    %p291 = scmp.eq.s32.totalorder %s290, 0
    %s293 = sadd.s32 %s292, 1
    %s294 = scalar_select %p291, %s292, %s293
    %p297 = pneg %p291
    %p298 = scmp.eq.s32.totalorder %s18, 7
    %p299 = por %p297, %p298
    %p300 = scmp.ne.s32.totalorder %s292, %s295
    %p301 = scmp.eq.s32.totalorder %s18, 0
    %p302 = por %p300, %p301
    %p303 = scmp.ne.s32.totalorder %s292, %s295
    %p304 = scmp.eq.s32.totalorder %s23, 7
    %p305 = por %p303, %p304
    %p306 = scmp.ne.s32.totalorder %s295, %s296
    %p307 = scmp.eq.s32.totalorder %s23, 0
    %p308 = por %p306, %p307
    %p309 = scmp.ne.s32.totalorder %s295, %s296
    %p310 = scmp.eq.s32.totalorder %s24, 7
    %p311 = por %p309, %p310
    %p313 = scmp.ne.s32.totalorder %s296, %s312
    %p314 = scmp.eq.s32.totalorder %s24, 0
    %p315 = por %p313, %p314
    %s316 = ssub.s32 %s25, %s37
    %p317 = scmp.eq.s32.totalorder %s316, 0
    %s319 = sadd.s32 %s318, 1
    %s320 = scalar_select %p317, %s318, %s319
    %p323 = pneg %p317
    %p324 = scmp.eq.s32.totalorder %s18, 7
    %p325 = por %p323, %p324
    %p326 = scmp.ne.s32.totalorder %s318, %s321
    %p327 = scmp.eq.s32.totalorder %s18, 0
    %p328 = por %p326, %p327
    %p329 = scmp.ne.s32.totalorder %s318, %s321
    %p330 = scmp.eq.s32.totalorder %s23, 7
    %p331 = por %p329, %p330
    %p332 = scmp.ne.s32.totalorder %s321, %s322
    %p333 = scmp.eq.s32.totalorder %s23, 0
    %p334 = por %p332, %p333
    %p335 = scmp.ne.s32.totalorder %s321, %s322
    %p336 = scmp.eq.s32.totalorder %s24, 7
    %p337 = por %p335, %p336
    %p339 = scmp.ne.s32.totalorder %s322, %s338
    %p340 = scmp.eq.s32.totalorder %s24, 0
    %p341 = por %p339, %p340
    %p342 = scmp.le.s32.totalorder 1, %s18
    %p343 = scmp.lt.s32.totalorder %s18, 9
    %p344 = pnand %p342, %p343
    %p345 = pneg %p344
    // Predicated region
    $region9: #{forward.1} parent=5 // pred_check
      _
    $region10: #{forward.1} parent=5 // pred_check_branch
      %347 = sbr.rel (%p344) target = $region12
    $region11: #{forward.1} parent=5 // pred_region
      %s348 = ssub.s32 %s18, 1
      // Predicated region
      $region13: #{forward.1} parent=11 // pred_check
        %p349 = pneg %p259
      $region14: #{forward.1} parent=11 // pred_check_branch
        %351 = sbr.rel (%p349) target = $region16
      $region15: #{forward.1} parent=11 // pred_region
        _
      $region16: #{forward.1} parent=11 // pred_fallthru
        _
      // Predicated region
      $region17: #{forward.1} parent=11 // pred_check
        %p352 = pneg %p280
      $region18: #{forward.1} parent=11 // pred_check_branch
        %354 = sbr.rel (%p352) target = $region20
      $region19: #{forward.1} parent=11 // pred_region
        _
      $region20: #{forward.1} parent=11 // pred_fallthru
        _
    $region12: #{forward.1} parent=5 // pred_fallthru
      _
    %p355 = scmp.lt.s32.totalorder %s18, 8
    // Predicated region
    $region21: #{forward.1} parent=5 // pred_check
      %p356 = pneg %p355
    $region22: #{forward.1} parent=5 // pred_check_branch
      %358 = sbr.rel (%p356) target = $region24
    $region23: #{forward.1} parent=5 // pred_region
      // Predicated region
      $region25: #{forward.1} parent=23 // pred_check
        %p359 = pneg %p50
      $region26: #{forward.1} parent=23 // pred_check_branch
        %361 = sbr.rel (%p359) target = $region28
      $region27: #{forward.1} parent=23 // pred_region
        %p362 = scmp.lt.s32.totalorder %s25, 3
        %s363 = scalar_select %p362, %s25, 3
        %s364 = smul.addr %s363, 3
        %s365 = smul.addr %s364, 8
        %s366 = scalar_lea.vmem %s0, %s365
      $region28: #{forward.1} parent=23 // pred_fallthru
        _
      // Predicated region
      $region29: #{forward.1} parent=23 // pred_check
        %p367 = pneg %p76
      $region30: #{forward.1} parent=23 // pred_check_branch
        %369 = sbr.rel (%p367) target = $region32
      $region31: #{forward.1} parent=23 // pred_region
        %p370 = scmp.lt.s32.totalorder %s26, 1
        %s371 = scalar_select %p370, %s26, 1
        %s372 = smul.addr %s371, 4
        %s373 = smul.addr %s372, 4
        %s374 = scalar_lea.vmem %s1, %s373
      $region32: #{forward.1} parent=23 // pred_fallthru
        _
      // Predicated region
      $region33: #{forward.1} parent=23 // pred_check
        %p375 = pneg %p102
      $region34: #{forward.1} parent=23 // pred_check_branch
        %377 = sbr.rel (%p375) target = $region36
      $region35: #{forward.1} parent=23 // pred_region
        %p378 = scmp.lt.s32.totalorder %s26, 1
        %s379 = scalar_select %p378, %s26, 1
        %s380 = scalar_lea.vmem %s2, %s379
      $region36: #{forward.1} parent=23 // pred_fallthru
        _
      // Predicated region
      $region37: #{forward.1} parent=23 // pred_check
        %p381 = pneg %p128
      $region38: #{forward.1} parent=23 // pred_check_branch
        %383 = sbr.rel (%p381) target = $region40
      $region39: #{forward.1} parent=23 // pred_region
        %p384 = scmp.lt.s32.totalorder %s26, 1
        %s385 = scalar_select %p384, %s26, 1
        %s386 = smul.addr %s385, 4
        %s387 = smul.addr %s386, 4
        %s388 = scalar_lea.vmem %s3, %s387
      $region40: #{forward.1} parent=23 // pred_fallthru
        _
      // Predicated region
      $region41: #{forward.1} parent=23 // pred_check
        %p389 = pneg %p154
      $region42: #{forward.1} parent=23 // pred_check_branch
        %391 = sbr.rel (%p389) target = $region44
      $region43: #{forward.1} parent=23 // pred_region
        %p392 = scmp.lt.s32.totalorder %s26, 1
        %s393 = scalar_select %p392, %s26, 1
        %s394 = scalar_lea.vmem %s4, %s393
      $region44: #{forward.1} parent=23 // pred_fallthru
        _
      // Predicated region
      $region45: #{forward.1} parent=23 // pred_check
        %p395 = pneg %p180
      $region46: #{forward.1} parent=23 // pred_check_branch
        %397 = sbr.rel (%p395) target = $region48
      $region47: #{forward.1} parent=23 // pred_region
        %p398 = scmp.lt.s32.totalorder %s26, 1
        %s399 = scalar_select %p398, %s26, 1
        %s400 = smul.addr %s399, 2
        %s401 = smul.addr %s400, 4
        %s402 = scalar_lea.vmem %s5, %s401
      $region48: #{forward.1} parent=23 // pred_fallthru
        _
      // Predicated region
      $region49: #{forward.1} parent=23 // pred_check
        %p403 = pneg %p206
      $region50: #{forward.1} parent=23 // pred_check_branch
        %405 = sbr.rel (%p403) target = $region52
      $region51: #{forward.1} parent=23 // pred_region
        %p406 = scmp.lt.s32.totalorder %s26, 1
        %s407 = scalar_select %p406, %s26, 1
        %s408 = scalar_lea.vmem %s6, %s407
      $region52: #{forward.1} parent=23 // pred_fallthru
        _
      // Predicated region
      $region53: #{forward.1} parent=23 // pred_check
        %p409 = pneg %p232
      $region54: #{forward.1} parent=23 // pred_check_branch
        %411 = sbr.rel (%p409) target = $region56
      $region55: #{forward.1} parent=23 // pred_region
        %p412 = scmp.lt.s32.totalorder %s26, 1
        %s413 = scalar_select %p412, %s26, 1
        %s414 = smul.addr %s413, 4
        %s415 = scalar_lea.vmem %s7, %s414
      $region56: #{forward.1} parent=23 // pred_fallthru
        _
    $region24: #{forward.1} parent=5 // pred_fallthru
      _
    %p416 = scmp.le.s32.totalorder 1, %s18
    %p417 = scmp.lt.s32.totalorder %s18, 9
    %p418 = pnand %p416, %p417
    %p419 = pneg %p418
    // Predicated region
    $region57: #{forward.1} parent=5 // pred_check
      _
    $region58: #{forward.1} parent=5 // pred_check_branch
      %421 = sbr.rel (%p418) target = $region60
    $region59: #{forward.1} parent=5 // pred_region
      %s422 = ssub.s32 %s18, 1
      %p423 = scmp.lt.s32.totalorder %s27, 3
      %s424 = scalar_select %p423, %s27, 3
      %s425 = smul.addr %s424, 3
      %s426 = smul.addr %s425, 8
      %s427 = scalar_lea.vmem %s0, %s426
      %p428 = pneg %p56
      %p429 = pneg %p53
      %p430 = scmp.lt.s32.totalorder %s28, 1
      %s431 = scalar_select %p430, %s28, 1
      %s432 = smul.addr %s431, 4
      %s433 = smul.addr %s432, 4
      %s434 = scalar_lea.vmem %s1, %s433
      %p435 = pneg %p82
      %p436 = pneg %p79
      %p437 = scmp.lt.s32.totalorder %s28, 1
      %s438 = scalar_select %p437, %s28, 1
      %s439 = scalar_lea.vmem %s2, %s438
      %p440 = pneg %p108
      %p441 = pneg %p105
      %p442 = scmp.lt.s32.totalorder %s28, 1
      %s443 = scalar_select %p442, %s28, 1
      %s444 = smul.addr %s443, 4
      %s445 = smul.addr %s444, 4
      %s446 = scalar_lea.vmem %s3, %s445
      %p447 = pneg %p134
      %p448 = pneg %p131
      %p449 = scmp.lt.s32.totalorder %s28, 1
      %s450 = scalar_select %p449, %s28, 1
      %s451 = scalar_lea.vmem %s4, %s450
      %p452 = pneg %p160
      %p453 = pneg %p157
      %p454 = scmp.lt.s32.totalorder %s28, 1
      %s455 = scalar_select %p454, %s28, 1
      %s456 = smul.addr %s455, 2
      %s457 = smul.addr %s456, 4
      %s458 = scalar_lea.vmem %s5, %s457
      %p459 = pneg %p186
      %p460 = pneg %p183
      %p461 = scmp.lt.s32.totalorder %s28, 1
      %s462 = scalar_select %p461, %s28, 1
      %s463 = scalar_lea.vmem %s6, %s462
      %p464 = pneg %p212
      %p465 = pneg %p209
      %p466 = scmp.lt.s32.totalorder %s28, 1
      %s467 = scalar_select %p466, %s28, 1
      %s468 = smul.addr %s467, 4
      %s469 = scalar_lea.vmem %s7, %s468
      %p470 = pneg %p238
      %p471 = pneg %p235
      %p472 = pneg %p259
      %p473 = pneg %p256
      %p474 = pneg %p280
      %p475 = pneg %p277
      %p476 = pneg %p308
      %p477 = pneg %p305
      %p478 = scmp.lt.s32.totalorder %s27, 3
      %s479 = scalar_select %p478, %s27, 3
      %p480 = scmp.lt.s32.totalorder %s28, 1
      %s481 = scalar_select %p480, %s28, 1
      %s482 = smul.addr %s481, 3
      %s483 = smul.addr %s479, 6
      %s484 = sadd.s32 %s482, %s483
      %s485 = smul.addr %s484, 8
      %s486 = scalar_lea.vmem %s10, %s485
      %p487 = pneg %p334
      %p488 = pneg %p331
      %p489 = scmp.lt.s32.totalorder %s27, 3
      %s490 = scalar_select %p489, %s27, 3
      %s491 = smul.addr %s490, 3
      %s492 = smul.addr %s491, 8
      %s493 = scalar_lea.vmem %s11, %s492
      %p494 = scmp.lt.s32.totalorder %s27, 3
      %s495 = scalar_select %p494, %s27, 3
      %s496 = smul.addr %s495, 3
      %s497 = smul.addr %s496, 8
      %s498 = scalar_lea.vmem %s0, %s497
      %p499 = scmp.lt.s32.totalorder %s28, 1
      %s500 = scalar_select %p499, %s28, 1
      %s501 = smul.addr %s500, 4
      %s502 = smul.addr %s501, 4
      %s503 = scalar_lea.vmem %s1, %s502
      %p504 = scmp.lt.s32.totalorder %s28, 1
      %s505 = scalar_select %p504, %s28, 1
      %s506 = scalar_lea.vmem %s2, %s505
      %p507 = scmp.lt.s32.totalorder %s28, 1
      %s508 = scalar_select %p507, %s28, 1
      %s509 = smul.addr %s508, 4
      %s510 = smul.addr %s509, 4
      %s511 = scalar_lea.vmem %s3, %s510
      %p512 = scmp.lt.s32.totalorder %s28, 1
      %s513 = scalar_select %p512, %s28, 1
      %s514 = scalar_lea.vmem %s4, %s513
      %p515 = scmp.lt.s32.totalorder %s28, 1
      %s516 = scalar_select %p515, %s28, 1
      %s517 = smul.addr %s516, 2
      %s518 = smul.addr %s517, 4
      %s519 = scalar_lea.vmem %s5, %s518
      %p520 = scmp.lt.s32.totalorder %s28, 1
      %s521 = scalar_select %p520, %s28, 1
      %s522 = scalar_lea.vmem %s6, %s521
      %p523 = scmp.lt.s32.totalorder %s28, 1
      %s524 = scalar_select %p523, %s28, 1
      %s525 = smul.addr %s524, 4
      %s526 = scalar_lea.vmem %s7, %s525
      %p527 = scmp.lt.s32.totalorder %s27, 3
      %s528 = scalar_select %p527, %s27, 3
      %p529 = scmp.lt.s32.totalorder %s28, 1
      %s530 = scalar_select %p529, %s28, 1
      %s531 = smul.addr %s530, 3
      %s532 = smul.addr %s528, 6
      %s533 = sadd.s32 %s531, %s532
      %s534 = smul.addr %s533, 8
      %s535 = scalar_lea.vmem %s10, %s534
      %p536 = scmp.lt.s32.totalorder %s27, 3
      %s537 = scalar_select %p536, %s27, 3
      %s538 = smul.addr %s537, 3
      %s539 = smul.addr %s538, 8
      %s540 = scalar_lea.vmem %s11, %s539
      %p542 = scmp.eq.s32.totalorder %s28, 0
      // Predicated region
      $region61: #{forward.1} parent=59 // pred_check
        %p543 = pneg %p542
      $region62: #{forward.1} parent=59 // pred_check_branch
        %545 = sbr.rel (%p543) target = $region64
      $region63: #{forward.1} parent=59 // pred_region
        %v546 = vld [vmem:[%s498] sm:$0xff]
        %v547 = vld [vmem:[%s498 + $0x8] sm:$0xff]
        %v548 = vld [vmem:[%s498 + $0x10] sm:$0xf]
        %vm549 = vcmask 261120
        %550 = vst.msk [vmem:[#allocation2] sm:$0xff] %vm549, %v546
        %551 = vst.msk [vmem:[#allocation2 + $0x8] sm:$0xff] %vm549, %v547
        %vm552 = vcmask 257024
        %553 = vst.msk [vmem:[#allocation2 + $0x10] sm:$0xf] %vm552, %v548
      $region64: #{forward.1} parent=59 // pred_fallthru
        _
      %v554 = vld [vmem:[#allocation2] sm:$0xff]
      %v555 = vld [vmem:[#allocation2 + $0x8] sm:$0xff]
      %v556 = vld [vmem:[#allocation2 + $0x10] sm:$0xf]
      %v557 = vpack.c.bf16 %v555, %v554
      %v558 = vpack.c.bf16 %v556, %v556
      %v559 = vld [vmem:[%s503] sm:$0xf]
      %v560 = vld [vmem:[%s503 + $0x4] sm:$0xf]
      %v561 = vld [vmem:[%s503 + $0x8] sm:$0xf]
      %v562 = vld [vmem:[%s503 + $0xc] sm:$0xf]
      %v563 = vld [vmem:[%s506] sm:$0x1]
      %v565 = vlaneseq
      %v566 = vshrl.u32 %v565, 7
      %v567 = vsub.s32 0, %v566
      %v568 = vrot.slane %v563, %v567
      %v574 = vunpack.c.l.b16 %v559
      %v575 = vunpack.c.l.b16 %v560
      %v576 = vunpack.c.l.b16 %v561
      %v577 = vunpack.c.l.b16 %v562
      %v578 = vpack.c.b16 %v575, %v574
      %v579 = vpack.c.b16 %v577, %v576
      %vm582 = vcmask 261120
      %v584 = vsel %vm582, %v557, 0
      %v587 = vsel %vm582, %v558, 0
      %589 = vmatprep.subr.bf16.mxu0 0
      %590 = vmatpush1.bf16.msra.mxu0 0
      %591 = vmatprep.subr.bf16.mxu0 0
      %592 = vmatpush1.bf16.msra.mxu0 0
      %593 = vmatprep.subr.bf16.mxu0 0
      %594 = vmatpush1.bf16.msra.mxu0 0
      %595 = vmatprep.subr.bf16.mxu0 0
      %596 = vmatpush1.bf16.msra.mxu0 0
      %597 = vmatprep.subr.bf16.mxu0 0
      %598 = vmatpush1.bf16.msra.mxu0 0
      %599 = vmatprep.subr.bf16.mxu0 0
      %600 = vmatpush1.bf16.msra.mxu0 0
      %601 = vmatprep.subr.bf16.mxu0 0
      %602 = vmatpush1.bf16.msra.mxu0 %v579
      %603 = vmatprep.subr.bf16.mxu0 0
      %604 = vmatpush1.bf16.msra.mxu0 %v578
      %605 = vmatprep.subr.bf16.mxu0 0
      %606 = vmatpush2.bf16.msra.mxu0 0
      %607 = vmatprep.subr.bf16.mxu0 0
      %608 = vmatpush2.bf16.msra.mxu0 0
      %609 = vmatprep.subr.bf16.mxu0 0
      %610 = vmatpush2.bf16.msra.mxu0 0
      %611 = vmatprep.subr.bf16.mxu0 0
      %612 = vmatpush2.bf16.msra.mxu0 0
      %613 = vmatprep.subr.bf16.mxu0 0
      %614 = vmatpush2.bf16.msra.mxu0 0
      %615 = vmatprep.subr.bf16.mxu0 0
      %616 = vmatpush2.bf16.msra.mxu0 0
      %617 = vmatprep.subr.bf16.mxu0 0
      %618 = vmatpush2.bf16.msra.mxu0 0
      %619 = vmatprep.subr.bf16.mxu0 0
      %620 = vmatpush2.bf16.msra.mxu0 0
      %621 = vmatprep.mubr.bf16.mxu0 0
      %622 = vmatmul.mubr.bf16.gmra.mxu0 %v584
      %v623 = vpop.f32.mrf.mxu0
      %v624 = vadd.f32 %v568, %v623
      %v625 = vpop.f32.mrf.mxu0
      %v626 = vpop.f32.mrf.mxu0
      %v627 = vadd.f32 %v568, %v626
      %v628 = vpop.f32.mrf.mxu0
      %629 = vmatprep.mubr.bf16.mxu0 0
      %630 = vmatmul.mubr.bf16.gmra.mxu0 %v587
      %v631 = vpop.f32.mrf.mxu0
      %v632 = vadd.f32 %v568, %v631
      %v633 = vpop.f32.mrf.mxu0
      %v634 = vpop.f32.mrf.mxu0
      %v635 = vpop.f32.mrf.mxu0
      %636 = vdwg.mxu0
      %640 = vrot.lane.b32.xlu0 %v624, 96
      %v641 = vpop.permute.xlu0 %640
      %642 = vrot.lane.b32.xlu0 %v627, 96
      %v643 = vpop.permute.xlu0 %642
      %644 = vrot.lane.b32.xlu0 %v632, 96
      %v645 = vpop.permute.xlu0 %644
      %v646 = vsel %vm582, %v624, 0
      %v648 = vsel %vm582, %v627, 0
      %v650 = vsel %vm582, %v632, 0
      %v652 = vsel %vm582, %v641, 0
      %v654 = vsel %vm582, %v643, 0
      %v656 = vsel %vm582, %v645, 0
      %658 = vmatprep.subr.mxu0 0.0
      %659 = vmatpush1.xpose.msra.mxu0 0.0
      %660 = vmatprep.subr.mxu0 0.0
      %661 = vmatpush1.xpose.msra.mxu0 0.0
      %662 = vmatprep.subr.mxu0 0.0
      %663 = vmatpush1.xpose.msra.mxu0 0.0
      %664 = vmatprep.subr.mxu0 0.0
      %665 = vmatpush1.xpose.msra.mxu0 0.0
      %666 = vmatprep.subr.mxu0 0.0
      %667 = vmatpush1.xpose.msra.mxu0 0.0
      %668 = vmatprep.subr.mxu0 0.0
      %669 = vmatpush1.xpose.msra.mxu0 0.0
      %670 = vmatprep.subr.mxu0 0.0
      %671 = vmatpush1.xpose.msra.mxu0 0.0
      %672 = vmatprep.subr.mxu0 0.0
      %673 = vmatpush1.xpose.msra.mxu0 0.0
      %674 = vmatprep.subr.mxu0 0.0
      %675 = vmatpush1.xpose.msra.mxu0 0.0
      %676 = vmatprep.subr.mxu0 0.0
      %677 = vmatpush1.xpose.msra.mxu0 0.0
      %678 = vmatprep.subr.mxu0 0.0
      %679 = vmatpush1.xpose.msra.mxu0 0.0
      %680 = vmatprep.subr.mxu0 0.0
      %681 = vmatpush1.xpose.msra.mxu0 0.0
      %682 = vmatprep.subr.mxu0 0.0
      %683 = vmatpush1.xpose.msra.mxu0 0.0
      %684 = vmatprep.subr.mxu0 0.0
      %685 = vmatpush1.xpose.msra.mxu0 %v656
      %686 = vmatprep.subr.mxu0 0.0
      %687 = vmatpush1.xpose.msra.mxu0 %v654
      %688 = vmatprep.subr.mxu0 0.0
      %689 = vmatpush1.xpose.msra.mxu0 %v652
      %690 = vmatprep.subr.mxu0 0.0
      %691 = vmatpush2.xpose.msra.mxu0 0.0
      %692 = vmatprep.subr.mxu0 0.0
      %693 = vmatpush2.xpose.msra.mxu0 0.0
      %694 = vmatprep.subr.mxu0 0.0
      %695 = vmatpush2.xpose.msra.mxu0 0.0
      %696 = vmatprep.subr.mxu0 0.0
      %697 = vmatpush2.xpose.msra.mxu0 0.0
      %698 = vmatprep.subr.mxu0 0.0
      %699 = vmatpush2.xpose.msra.mxu0 0.0
      %700 = vmatprep.subr.mxu0 0.0
      %701 = vmatpush2.xpose.msra.mxu0 0.0
      %702 = vmatprep.subr.mxu0 0.0
      %703 = vmatpush2.xpose.msra.mxu0 0.0
      %704 = vmatprep.subr.mxu0 0.0
      %705 = vmatpush2.xpose.msra.mxu0 0.0
      %706 = vmatprep.subr.mxu0 0.0
      %707 = vmatpush2.xpose.msra.mxu0 0.0
      %708 = vmatprep.subr.mxu0 0.0
      %709 = vmatpush2.xpose.msra.mxu0 0.0
      %710 = vmatprep.subr.mxu0 0.0
      %711 = vmatpush2.xpose.msra.mxu0 0.0
      %712 = vmatprep.subr.mxu0 0.0
      %713 = vmatpush2.xpose.msra.mxu0 0.0
      %714 = vmatprep.subr.mxu0 0.0
      %715 = vmatpush2.xpose.msra.mxu0 0.0
      %716 = vmatprep.subr.mxu0 0.0
      %717 = vmatpush2.xpose.msra.mxu0 0.0
      %718 = vmatprep.subr.mxu0 0.0
      %719 = vmatpush2.xpose.msra.mxu0 0.0
      %720 = vmatprep.subr.mxu0 0.0
      %721 = vmatpush2.xpose.msra.mxu0 0.0
      %722 = vmatprep.mubr.f32.mxu0 0.0
      %723 = vmatmul.mubr.f32.gmra.mxu0 %v646
      %v724 = vpop.f32.mrf.mxu0
      %v725 = vadd.f32 0.0, %v724
      %v726 = vpop.f32.mrf.mxu0
      %727 = vmatprep.mubr.f32.mxu0 0.0
      %728 = vmatmul.mubr.f32.gmra.mxu0 %v648
      %v729 = vpop.f32.mrf.mxu0
      %v730 = vadd.f32 0.0, %v729
      %v731 = vpop.f32.mrf.mxu0
      %732 = vmatprep.mubr.f32.mxu0 0.0
      %733 = vmatmul.mubr.f32.gmra.mxu0 %v650
      %v734 = vpop.f32.mrf.mxu0
      %v735 = vadd.f32 0.0, %v734
      %v736 = vpop.f32.mrf.mxu0
      %737 = vdwg.mxu0
      %v738 = vmul.f32 %v725, 0.17677669
      %v739 = vmul.f32 %v730, 0.17677669
      %v740 = vmul.f32 %v735, 0.17677669
      %vm741 = vcmask 162816
      %v742 = vsel %vm741, %v738, -inf
      %743 = vmax.xlane.f32.xlu0 %v742
      %v744 = vpop.xlane.xlu0 %743
      %v745 = vsel %vm741, %v739, -inf
      %746 = vmax.xlane.f32.xlu0 %v745
      %v747 = vpop.xlane.xlu0 %746
      %vm748 = vcmask 158720
      %v749 = vsel %vm748, %v740, -inf
      %750 = vmax.xlane.f32.xlu0 %v749
      %v751 = vpop.xlane.xlu0 %750
      %v752 = vsub.f32 %v738, %v744
      %v753 = vsub.f32 %v739, %v747
      %v754 = vsub.f32 %v740, %v751
      %v755 = vmul.f32 %v752, 1.442695
      %v756 = vpow.pop %v755
      %v757 = vmul.f32 %v753, 1.442695
      %v758 = vpow.pop %v757
      %v759 = vmul.f32 %v754, 1.442695
      %v760 = vpow.pop %v759
      %v761 = vsel %vm741, %v756, 0.0
      %762 = vadd.xlane.f32.xlu0 %v761
      %v763 = vpop.xlane.xlu0 %762
      %v764 = vsel %vm741, %v758, 0.0
      %765 = vadd.xlane.f32.xlu0 %v764
      %v766 = vpop.xlane.xlu0 %765
      %v767 = vsel %vm748, %v760, 0.0
      %768 = vadd.xlane.f32.xlu0 %v767
      %v769 = vpop.xlane.xlu0 %768
      %v770 = vrcp.pop %v763
      %v771 = vrcp.pop %v766
      %v772 = vrcp.pop %v769
      %v773 = vmul.f32 %v756, %v770
      %v774 = vmul.f32 %v758, %v771
      %v775 = vmul.f32 %v760, %v772
      %v776 = vld [vmem:[%s526] sm:$0xf]
      %777 = vrot.lane.b32.xlu0 %v624, 64
      %v778 = vpop.permute.xlu0 %777
      %779 = vrot.lane.b32.xlu0 %v627, 64
      %v780 = vpop.permute.xlu0 %779
      %781 = vrot.lane.b32.xlu0 %v632, 64
      %v782 = vpop.permute.xlu0 %781
      %v786 = vsel %vm741, %v773, 0
      %v789 = vsel %vm741, %v774, 0
      %v792 = vsel %vm741, %v775, 0
      %vm794 = vcmask 1043456
      %v795 = vsel %vm794, %v782, 0
      %797 = vmatprep.subr.mxu0 0.0
      %798 = vmatpush1.msra.mxu0 0.0
      %799 = vmatprep.subr.mxu0 0.0
      %800 = vmatpush1.msra.mxu0 0.0
      %801 = vmatprep.subr.mxu0 0.0
      %802 = vmatpush1.msra.mxu0 0.0
      %803 = vmatprep.subr.mxu0 0.0
      %804 = vmatpush1.msra.mxu0 0.0
      %805 = vmatprep.subr.mxu0 0.0
      %806 = vmatpush1.msra.mxu0 0.0
      %807 = vmatprep.subr.mxu0 0.0
      %808 = vmatpush1.msra.mxu0 0.0
      %809 = vmatprep.subr.mxu0 0.0
      %810 = vmatpush1.msra.mxu0 0.0
      %811 = vmatprep.subr.mxu0 0.0
      %812 = vmatpush1.msra.mxu0 0.0
      %813 = vmatprep.subr.mxu0 0.0
      %814 = vmatpush1.msra.mxu0 0.0
      %815 = vmatprep.subr.mxu0 0.0
      %816 = vmatpush1.msra.mxu0 0.0
      %817 = vmatprep.subr.mxu0 0.0
      %818 = vmatpush1.msra.mxu0 0.0
      %819 = vmatprep.subr.mxu0 0.0
      %820 = vmatpush1.msra.mxu0 0.0
      %821 = vmatprep.subr.mxu0 0.0
      %822 = vmatpush1.msra.mxu0 0.0
      %823 = vmatprep.subr.mxu0 0.0
      %824 = vmatpush1.msra.mxu0 %v795
      %825 = vmatprep.subr.mxu0 0.0
      %826 = vmatpush1.msra.mxu0 %v780
      %827 = vmatprep.subr.mxu0 0.0
      %828 = vmatpush1.msra.mxu0 %v778
      %829 = vmatprep.subr.mxu0 0.0
      %830 = vmatpush2.msra.mxu0 0.0
      %831 = vmatprep.subr.mxu0 0.0
      %832 = vmatpush2.msra.mxu0 0.0
      %833 = vmatprep.subr.mxu0 0.0
      %834 = vmatpush2.msra.mxu0 0.0
      %835 = vmatprep.subr.mxu0 0.0
      %836 = vmatpush2.msra.mxu0 0.0
      %837 = vmatprep.subr.mxu0 0.0
      %838 = vmatpush2.msra.mxu0 0.0
      %839 = vmatprep.subr.mxu0 0.0
      %840 = vmatpush2.msra.mxu0 0.0
      %841 = vmatprep.subr.mxu0 0.0
      %842 = vmatpush2.msra.mxu0 0.0
      %843 = vmatprep.subr.mxu0 0.0
      %844 = vmatpush2.msra.mxu0 0.0
      %845 = vmatprep.subr.mxu0 0.0
      %846 = vmatpush2.msra.mxu0 0.0
      %847 = vmatprep.subr.mxu0 0.0
      %848 = vmatpush2.msra.mxu0 0.0
      %849 = vmatprep.subr.mxu0 0.0
      %850 = vmatpush2.msra.mxu0 0.0
      %851 = vmatprep.subr.mxu0 0.0
      %852 = vmatpush2.msra.mxu0 0.0
      %853 = vmatprep.subr.mxu0 0.0
      %854 = vmatpush2.msra.mxu0 0.0
      %855 = vmatprep.subr.mxu0 0.0
      %856 = vmatpush2.msra.mxu0 0.0
      %857 = vmatprep.subr.mxu0 0.0
      %858 = vmatpush2.msra.mxu0 0.0
      %859 = vmatprep.subr.mxu0 0.0
      %860 = vmatpush2.msra.mxu0 0.0
      %861 = vmatprep.mubr.f32.mxu0 0.0
      %862 = vmatmul.mubr.f32.gmra.mxu0 %v786
      %v863 = vpop.f32.mrf.mxu0
      %v864 = vadd.f32 %v554, %v863
      %v865 = vpop.f32.mrf.mxu0
      %866 = vmatprep.mubr.f32.mxu0 0.0
      %867 = vmatmul.mubr.f32.gmra.mxu0 %v789
      %v868 = vpop.f32.mrf.mxu0
      %v869 = vadd.f32 %v555, %v868
      %v870 = vpop.f32.mrf.mxu0
      %871 = vmatprep.mubr.f32.mxu0 0.0
      %872 = vmatmul.mubr.f32.gmra.mxu0 %v792
      %v873 = vpop.f32.mrf.mxu0
      %v874 = vadd.f32 %v556, %v873
      %v875 = vpop.f32.mrf.mxu0
      %876 = vdwg.mxu0
      %v877 = vsel %vm582, %v864, 0.0
      %878 = vadd.xlane.f32.xlu0 %v877
      %v879 = vpop.xlane.xlu0 %878
      %v880 = vsel %vm582, %v869, 0.0
      %881 = vadd.xlane.f32.xlu0 %v880
      %v882 = vpop.xlane.xlu0 %881
      %vm883 = vcmask 257024
      %v884 = vsel %vm883, %v874, 0.0
      %885 = vadd.xlane.f32.xlu0 %v884
      %v886 = vpop.xlane.xlu0 %885
      %v887 = vrcp.pop 32.0
      %v888 = vmul.f32 %v879, %v887
      %v889 = vmul.f32 %v882, %v887
      %v890 = vmul.f32 %v886, %v887
      %v891 = vmul.f32 %v864, %v864
      %v892 = vmul.f32 %v869, %v869
      %v893 = vmul.f32 %v874, %v874
      %v894 = vsel %vm582, %v891, 0.0
      %895 = vadd.xlane.f32.xlu0 %v894
      %v896 = vpop.xlane.xlu0 %895
      %v897 = vsel %vm582, %v892, 0.0
      %898 = vadd.xlane.f32.xlu0 %v897
      %v899 = vpop.xlane.xlu0 %898
      %v900 = vsel %vm883, %v893, 0.0
      %901 = vadd.xlane.f32.xlu0 %v900
      %v902 = vpop.xlane.xlu0 %901
      %v903 = vmul.f32 %v896, %v887
      %v904 = vmul.f32 %v899, %v887
      %v905 = vmul.f32 %v902, %v887
      %v906 = vsub.f32 %v864, %v888
      %v907 = vsub.f32 %v869, %v889
      %v908 = vsub.f32 %v874, %v890
      %v909 = vmul.f32 %v888, %v888
      %v910 = vmul.f32 %v889, %v889
      %v911 = vmul.f32 %v890, %v890
      %v912 = vsub.f32 %v903, %v909
      %v913 = vsub.f32 %v904, %v910
      %v914 = vsub.f32 %v905, %v911
      %v915 = vadd.f32 %v912, 1e-05
      %v916 = vadd.f32 %v913, 1e-05
      %v917 = vadd.f32 %v914, 1e-05
      %v918 = vrsqrt.pop %v915
      %v919 = vrsqrt.pop %v916
      %v920 = vrsqrt.pop %v917
      %v921 = vmul.f32 %v906, %v918
      %v922 = vmul.f32 %v907, %v919
      %v923 = vmul.f32 %v908, %v920
      %v924 = vlaneseq
      %v925 = vshrl.u32 %v924, 7
      %v926 = vsub.s32 0, %v925
      %v927 = vrot.slane %v776, %v926
      %v928 = vmul.f32 %v921, %v927
      %v929 = vmul.f32 %v922, %v927
      %v930 = vmul.f32 %v923, %v927
      %v931 = vlaneseq
      %v932 = vshrl.u32 %v931, 7
      %v933 = vsub.s32 1, %v932
      %v934 = vrot.slane %v776, %v933
      %v935 = vadd.f32 %v928, %v934
      %v936 = vadd.f32 %v929, %v934
      %v937 = vadd.f32 %v930, %v934
      %v938 = vpack.c.bf16 %v936, %v935
      %v939 = vpack.c.bf16 %v937, %v937
      %v940 = vld [vmem:[%s511] sm:$0xf]
      %v941 = vld [vmem:[%s511 + $0x4] sm:$0xf]
      %v942 = vld [vmem:[%s511 + $0x8] sm:$0xf]
      %v943 = vld [vmem:[%s511 + $0xc] sm:$0xf]
      %v944 = vld [vmem:[%s514] sm:$0x1]
      %v946 = vlaneseq
      %v947 = vshrl.u32 %v946, 7
      %v948 = vsub.s32 0, %v947
      %v949 = vrot.slane %v944, %v948
      %v955 = vunpack.c.l.b16 %v940
      %v956 = vunpack.c.l.b16 %v941
      %v957 = vunpack.c.l.b16 %v942
      %v958 = vunpack.c.l.b16 %v943
      %v959 = vpack.c.b16 %v956, %v955
      %v960 = vpack.c.b16 %v958, %v957
      %v964 = vsel %vm582, %v938, 0
      %v967 = vsel %vm582, %v939, 0
      %969 = vmatprep.subr.bf16.mxu0 0
      %970 = vmatpush1.bf16.msra.mxu0 0
      %971 = vmatprep.subr.bf16.mxu0 0
      %972 = vmatpush1.bf16.msra.mxu0 0
      %973 = vmatprep.subr.bf16.mxu0 0
      %974 = vmatpush1.bf16.msra.mxu0 0
      %975 = vmatprep.subr.bf16.mxu0 0
      %976 = vmatpush1.bf16.msra.mxu0 0
      %977 = vmatprep.subr.bf16.mxu0 0
      %978 = vmatpush1.bf16.msra.mxu0 0
      %979 = vmatprep.subr.bf16.mxu0 0
      %980 = vmatpush1.bf16.msra.mxu0 0
      %981 = vmatprep.subr.bf16.mxu0 0
      %982 = vmatpush1.bf16.msra.mxu0 %v960
      %983 = vmatprep.subr.bf16.mxu0 0
      %984 = vmatpush1.bf16.msra.mxu0 %v959
      %985 = vmatprep.subr.bf16.mxu0 0
      %986 = vmatpush2.bf16.msra.mxu0 0
      %987 = vmatprep.subr.bf16.mxu0 0
      %988 = vmatpush2.bf16.msra.mxu0 0
      %989 = vmatprep.subr.bf16.mxu0 0
      %990 = vmatpush2.bf16.msra.mxu0 0
      %991 = vmatprep.subr.bf16.mxu0 0
      %992 = vmatpush2.bf16.msra.mxu0 0
      %993 = vmatprep.subr.bf16.mxu0 0
      %994 = vmatpush2.bf16.msra.mxu0 0
      %995 = vmatprep.subr.bf16.mxu0 0
      %996 = vmatpush2.bf16.msra.mxu0 0
      %997 = vmatprep.subr.bf16.mxu0 0
      %998 = vmatpush2.bf16.msra.mxu0 0
      %999 = vmatprep.subr.bf16.mxu0 0
      %1000 = vmatpush2.bf16.msra.mxu0 0
      %1001 = vmatprep.mubr.bf16.mxu0 0
      %1002 = vmatmul.mubr.bf16.gmra.mxu0 %v964
      %v1003 = vpop.f32.mrf.mxu0
      %v1004 = vadd.f32 %v949, %v1003
      %v1005 = vpop.f32.mrf.mxu0
      %v1006 = vpop.f32.mrf.mxu0
      %v1007 = vadd.f32 %v949, %v1006
      %v1008 = vpop.f32.mrf.mxu0
      %1009 = vmatprep.mubr.bf16.mxu0 0
      %1010 = vmatmul.mubr.bf16.gmra.mxu0 %v967
      %v1011 = vpop.f32.mrf.mxu0
      %v1012 = vadd.f32 %v949, %v1011
      %v1013 = vpop.f32.mrf.mxu0
      %v1014 = vpop.f32.mrf.mxu0
      %v1015 = vpop.f32.mrf.mxu0
      %1016 = vdwg.mxu0
      %v1017 = vmax.f32 %v1004, 0.0
      %v1018 = vmax.f32 %v1007, 0.0
      %v1019 = vmax.f32 %v1012, 0.0
      %v1020 = vpack.c.bf16 %v1018, %v1017
      %v1021 = vpack.c.bf16 %v1019, %v1019
      %v1022 = vld [vmem:[%s519] sm:$0xf]
      %v1023 = vld [vmem:[%s519 + $0x4] sm:$0xf]
      %v1024 = vld [vmem:[%s522] sm:$0x1]
      %v1026 = vlaneseq
      %v1027 = vshrl.u32 %v1026, 7
      %v1028 = vsub.s32 0, %v1027
      %v1029 = vrot.slane %v1024, %v1028
      %v1033 = vunpack.c.l.b16 %v1022
      %v1034 = vunpack.c.l.b16 %v1023
      %v1035 = vpack.c.b16 %v1034, %v1033
      %vm1037 = vcmask 130048
      %v1039 = vsel %vm1037, %v1020, 0
      %v1042 = vsel %vm1037, %v1021, 0
      %1044 = vmatprep.subr.bf16.mxu0 0
      %1045 = vmatpush1.bf16.msra.mxu0 0
      %1046 = vmatprep.subr.bf16.mxu0 0
      %1047 = vmatpush1.bf16.msra.mxu0 0
      %1048 = vmatprep.subr.bf16.mxu0 0
      %1049 = vmatpush1.bf16.msra.mxu0 0
      %1050 = vmatprep.subr.bf16.mxu0 0
      %1051 = vmatpush1.bf16.msra.mxu0 0
      %1052 = vmatprep.subr.bf16.mxu0 0
      %1053 = vmatpush1.bf16.msra.mxu0 0
      %1054 = vmatprep.subr.bf16.mxu0 0
      %1055 = vmatpush1.bf16.msra.mxu0 0
      %1056 = vmatprep.subr.bf16.mxu0 0
      %1057 = vmatpush1.bf16.msra.mxu0 0
      %1058 = vmatprep.subr.bf16.mxu0 0
      %1059 = vmatpush1.bf16.msra.mxu0 %v1035
      %1060 = vmatprep.subr.bf16.mxu0 0
      %1061 = vmatpush2.bf16.msra.mxu0 0
      %1062 = vmatprep.subr.bf16.mxu0 0
      %1063 = vmatpush2.bf16.msra.mxu0 0
      %1064 = vmatprep.subr.bf16.mxu0 0
      %1065 = vmatpush2.bf16.msra.mxu0 0
      %1066 = vmatprep.subr.bf16.mxu0 0
      %1067 = vmatpush2.bf16.msra.mxu0 0
      %1068 = vmatprep.subr.bf16.mxu0 0
      %1069 = vmatpush2.bf16.msra.mxu0 0
      %1070 = vmatprep.subr.bf16.mxu0 0
      %1071 = vmatpush2.bf16.msra.mxu0 0
      %1072 = vmatprep.subr.bf16.mxu0 0
      %1073 = vmatpush2.bf16.msra.mxu0 0
      %1074 = vmatprep.subr.bf16.mxu0 0
      %1075 = vmatpush2.bf16.msra.mxu0 0
      %1076 = vmatprep.mubr.bf16.mxu0 0
      %1077 = vmatmul.mubr.bf16.gmra.mxu0 %v1039
      %v1078 = vpop.f32.mrf.mxu0
      %v1079 = vadd.f32 %v1029, %v1078
      %v1080 = vpop.f32.mrf.mxu0
      %v1081 = vpop.f32.mrf.mxu0
      %v1082 = vadd.f32 %v1029, %v1081
      %v1083 = vpop.f32.mrf.mxu0
      %1084 = vmatprep.mubr.bf16.mxu0 0
      %1085 = vmatmul.mubr.bf16.gmra.mxu0 %v1042
      %v1086 = vpop.f32.mrf.mxu0
      %v1087 = vadd.f32 %v1029, %v1086
      %v1088 = vpop.f32.mrf.mxu0
      %v1089 = vpop.f32.mrf.mxu0
      %v1090 = vpop.f32.mrf.mxu0
      %1091 = vdwg.mxu0
      %v1092 = vadd.f32 %v1079, %v935
      %v1093 = vadd.f32 %v1082, %v936
      %v1094 = vadd.f32 %v1087, %v937
      %v1095 = vsel %vm582, %v1092, 0.0
      %1096 = vadd.xlane.f32.xlu0 %v1095
      %v1097 = vpop.xlane.xlu0 %1096
      %v1098 = vsel %vm582, %v1093, 0.0
      %1099 = vadd.xlane.f32.xlu0 %v1098
      %v1100 = vpop.xlane.xlu0 %1099
      %v1101 = vsel %vm883, %v1094, 0.0
      %1102 = vadd.xlane.f32.xlu0 %v1101
      %v1103 = vpop.xlane.xlu0 %1102
      %v1104 = vmul.f32 %v1097, %v887
      %v1105 = vmul.f32 %v1100, %v887
      %v1106 = vmul.f32 %v1103, %v887
      %v1107 = vmul.f32 %v1092, %v1092
      %v1108 = vmul.f32 %v1093, %v1093
      %v1109 = vmul.f32 %v1094, %v1094
      %v1110 = vsel %vm582, %v1107, 0.0
      %1111 = vadd.xlane.f32.xlu0 %v1110
      %v1112 = vpop.xlane.xlu0 %1111
      %v1113 = vsel %vm582, %v1108, 0.0
      %1114 = vadd.xlane.f32.xlu0 %v1113
      %v1115 = vpop.xlane.xlu0 %1114
      %v1116 = vsel %vm883, %v1109, 0.0
      %1117 = vadd.xlane.f32.xlu0 %v1116
      %v1118 = vpop.xlane.xlu0 %1117
      %v1119 = vmul.f32 %v1112, %v887
      %v1120 = vmul.f32 %v1115, %v887
      %v1121 = vmul.f32 %v1118, %v887
      %v1122 = vsub.f32 %v1092, %v1104
      %v1123 = vsub.f32 %v1093, %v1105
      %v1124 = vsub.f32 %v1094, %v1106
      %v1125 = vmul.f32 %v1104, %v1104
      %v1126 = vmul.f32 %v1105, %v1105
      %v1127 = vmul.f32 %v1106, %v1106
      %v1128 = vsub.f32 %v1119, %v1125
      %v1129 = vsub.f32 %v1120, %v1126
      %v1130 = vsub.f32 %v1121, %v1127
      %v1131 = vadd.f32 %v1128, 1e-05
      %v1132 = vadd.f32 %v1129, 1e-05
      %v1133 = vadd.f32 %v1130, 1e-05
      %v1134 = vrsqrt.pop %v1131
      %v1135 = vrsqrt.pop %v1132
      %v1136 = vrsqrt.pop %v1133
      %v1137 = vmul.f32 %v1122, %v1134
      %v1138 = vmul.f32 %v1123, %v1135
      %v1139 = vmul.f32 %v1124, %v1136
      %v1140 = vlaneseq
      %v1141 = vshrl.u32 %v1140, 7
      %v1142 = vsub.s32 2, %v1141
      %v1143 = vrot.slane %v776, %v1142
      %v1144 = vmul.f32 %v1137, %v1143
      %v1145 = vmul.f32 %v1138, %v1143
      %v1146 = vmul.f32 %v1139, %v1143
      %v1147 = vlaneseq
      %v1148 = vshrl.u32 %v1147, 7
      %v1149 = vsub.s32 3, %v1148
      %v1150 = vrot.slane %v776, %v1149
      %v1151 = vadd.f32 %v1144, %v1150
      %v1152 = vadd.f32 %v1145, %v1150
      %v1153 = vadd.f32 %v1146, %v1150
      %1154 = vst.msk [vmem:[#allocation2] sm:$0xff] %vm582, %v1151
      %1155 = vst.msk [vmem:[#allocation2 + $0x8] sm:$0xff] %vm582, %v1152
      %1156 = vst.msk [vmem:[#allocation2 + $0x10] sm:$0xf] %vm883, %v1153
      %1157 = vst.msk [vmem:[%s535] sm:$0xff] %vm582, %v1151
      %1158 = vst.msk [vmem:[%s535 + $0x8] sm:$0xff] %vm582, %v1152
      %1159 = vst.msk [vmem:[%s535 + $0x10] sm:$0xf] %vm883, %v1153
      %p1160 = scmp.eq.s32.totalorder %s28, 1
      // Predicated region
      $region65: #{forward.1} parent=59 // pred_check
        %p1161 = pneg %p1160
      $region66: #{forward.1} parent=59 // pred_check_branch
        %1163 = sbr.rel (%p1161) target = $region68
      $region67: #{forward.1} parent=59 // pred_region
        %v1164 = vpack.c.bf16 %v1152, %v1151
        %v1165 = vpack.c.bf16 %v1153, %v1153
        %v1166 = vld [vmem:[%s8] sm:$0xf]
        %v1167 = vld [vmem:[%s8 + $0x4] sm:$0xf]
        %v1168 = vld [vmem:[%s8 + $0x8] sm:$0xf]
        %v1169 = vld [vmem:[%s8 + $0xc] sm:$0xf]
        %v1170 = vld [vmem:[%s9] sm:$0x1]
        %v1172 = vlaneseq
        %v1173 = vshrl.u32 %v1172, 7
        %v1174 = vsub.s32 0, %v1173
        %v1175 = vrot.slane %v1170, %v1174
        %v1181 = vunpack.c.l.b16 %v1166
        %v1182 = vunpack.c.l.b16 %v1167
        %v1183 = vunpack.c.l.b16 %v1168
        %v1184 = vunpack.c.l.b16 %v1169
        %v1185 = vpack.c.b16 %v1182, %v1181
        %v1186 = vpack.c.b16 %v1184, %v1183
        %v1190 = vsel %vm582, %v1164, 0
        %v1193 = vsel %vm582, %v1165, 0
        %1195 = vmatprep.subr.bf16.mxu0 0
        %1196 = vmatpush1.bf16.msra.mxu0 0
        %1197 = vmatprep.subr.bf16.mxu0 0
        %1198 = vmatpush1.bf16.msra.mxu0 0
        %1199 = vmatprep.subr.bf16.mxu0 0
        %1200 = vmatpush1.bf16.msra.mxu0 0
        %1201 = vmatprep.subr.bf16.mxu0 0
        %1202 = vmatpush1.bf16.msra.mxu0 0
        %1203 = vmatprep.subr.bf16.mxu0 0
        %1204 = vmatpush1.bf16.msra.mxu0 0
        %1205 = vmatprep.subr.bf16.mxu0 0
        %1206 = vmatpush1.bf16.msra.mxu0 0
        %1207 = vmatprep.subr.bf16.mxu0 0
        %1208 = vmatpush1.bf16.msra.mxu0 %v1186
        %1209 = vmatprep.subr.bf16.mxu0 0
        %1210 = vmatpush1.bf16.msra.mxu0 %v1185
        %1211 = vmatprep.subr.bf16.mxu0 0
        %1212 = vmatpush2.bf16.msra.mxu0 0
        %1213 = vmatprep.subr.bf16.mxu0 0
        %1214 = vmatpush2.bf16.msra.mxu0 0
        %1215 = vmatprep.subr.bf16.mxu0 0
        %1216 = vmatpush2.bf16.msra.mxu0 0
        %1217 = vmatprep.subr.bf16.mxu0 0
        %1218 = vmatpush2.bf16.msra.mxu0 0
        %1219 = vmatprep.subr.bf16.mxu0 0
        %1220 = vmatpush2.bf16.msra.mxu0 0
        %1221 = vmatprep.subr.bf16.mxu0 0
        %1222 = vmatpush2.bf16.msra.mxu0 0
        %1223 = vmatprep.subr.bf16.mxu0 0
        %1224 = vmatpush2.bf16.msra.mxu0 0
        %1225 = vmatprep.subr.bf16.mxu0 0
        %1226 = vmatpush2.bf16.msra.mxu0 0
        %1227 = vmatprep.mubr.bf16.mxu0 0
        %1228 = vmatmul.mubr.bf16.gmra.mxu0 %v1190
        %v1229 = vpop.f32.mrf.mxu0
        %v1230 = vadd.f32 %v1175, %v1229
        %v1231 = vpop.f32.mrf.mxu0
        %v1232 = vpop.f32.mrf.mxu0
        %v1233 = vadd.f32 %v1175, %v1232
        %v1234 = vpop.f32.mrf.mxu0
        %1235 = vmatprep.mubr.bf16.mxu0 0
        %1236 = vmatmul.mubr.bf16.gmra.mxu0 %v1193
        %v1237 = vpop.f32.mrf.mxu0
        %v1238 = vadd.f32 %v1175, %v1237
        %v1239 = vpop.f32.mrf.mxu0
        %v1240 = vpop.f32.mrf.mxu0
        %v1241 = vpop.f32.mrf.mxu0
        %1242 = vdwg.mxu0
        %1243 = vmax.xlane.f32.xlu0 %v1230
        %v1244 = vpop.xlane.xlu0 %1243
        %1245 = vmax.xlane.f32.xlu0 %v1233
        %v1246 = vpop.xlane.xlu0 %1245
        %v1247 = vsel %vm794, %v1238, -inf
        %1248 = vmax.xlane.f32.xlu0 %v1247
        %v1249 = vpop.xlane.xlu0 %1248
        %v1250 = vsub.f32 %v1230, %v1244
        %v1251 = vsub.f32 %v1233, %v1246
        %v1252 = vsub.f32 %v1238, %v1249
        %v1253 = vmul.f32 %v1250, 1.442695
        %v1254 = vpow.pop %v1253
        %v1255 = vmul.f32 %v1251, 1.442695
        %v1256 = vpow.pop %v1255
        %v1257 = vmul.f32 %v1252, 1.442695
        %v1258 = vpow.pop %v1257
        %1259 = vadd.xlane.f32.xlu0 %v1254
        %v1260 = vpop.xlane.xlu0 %1259
        %1261 = vadd.xlane.f32.xlu0 %v1256
        %v1262 = vpop.xlane.xlu0 %1261
        %v1263 = vsel %vm794, %v1258, 0.0
        %1264 = vadd.xlane.f32.xlu0 %v1263
        %v1265 = vpop.xlane.xlu0 %1264
        %v1266 = vlog2.pop %v1260
        %v1267 = vmul.f32 %v1266, 0.6931472
        %v1268 = vlog2.pop %v1262
        %v1269 = vmul.f32 %v1268, 0.6931472
        %v1270 = vlog2.pop %v1265
        %v1271 = vmul.f32 %v1270, 0.6931472
        %v1272 = vsub.f32 %v1250, %v1267
        %v1273 = vsub.f32 %v1251, %v1269
        %v1274 = vsub.f32 %v1252, %v1271
        %1275 = vst [vmem:[%s540] sm:$0xff] %v1272
        %1276 = vst [vmem:[%s540 + $0x8] sm:$0xff] %v1273
        %1277 = vst [vmem:[%s540 + $0x10] sm:$0xf] %v1274
      $region68: #{forward.1} parent=59 // pred_fallthru
        _
      %p1278 = scmp.lt.s32.totalorder %s27, 3
      %s1279 = scalar_select %p1278, %s27, 3
      %p1280 = scmp.lt.s32.totalorder %s28, 1
      %s1281 = scalar_select %p1280, %s28, 1
      %s1282 = smul.addr %s1281, 3
      %s1283 = smul.addr %s1279, 6
      %s1284 = sadd.s32 %s1282, %s1283
      %s1285 = smul.addr %s1284, 8
      %s1286 = scalar_lea.vmem %s10, %s1285
      %p1287 = scmp.lt.s32.totalorder %s27, 3
      %s1288 = scalar_select %p1287, %s27, 3
      %s1289 = smul.addr %s1288, 3
      %s1290 = smul.addr %s1289, 8
      %s1291 = scalar_lea.vmem %s11, %s1290
      // Predicated region
      $region69: #{forward.1} parent=59 // pred_check
        %p1292 = pneg %p305
      $region70: #{forward.1} parent=59 // pred_check_branch
        %1294 = sbr.rel (%p1292) target = $region72
      $region71: #{forward.1} parent=59 // pred_region
        _
      $region72: #{forward.1} parent=59 // pred_fallthru
        _
      // Predicated region
      $region73: #{forward.1} parent=59 // pred_check
        %p1295 = pneg %p331
      $region74: #{forward.1} parent=59 // pred_check_branch
        %1297 = sbr.rel (%p1295) target = $region76
      $region75: #{forward.1} parent=59 // pred_region
        _
      $region76: #{forward.1} parent=59 // pred_fallthru
        _
    $region60: #{forward.1} parent=5 // pred_fallthru
      _
    %p1298 = scmp.le.s32.totalorder 2, %s18
    // Predicated region
    $region77: #{forward.1} parent=5 // pred_check
      %p1299 = pneg %p1298
    $region78: #{forward.1} parent=5 // pred_check_branch
      %1301 = sbr.rel (%p1299) target = $region80
    $region79: #{forward.1} parent=5 // pred_region
      %s1302 = ssub.s32 %s18, 2
      // Predicated region
      $region81: #{forward.1} parent=79 // pred_check
        %p1303 = pneg %p311
      $region82: #{forward.1} parent=79 // pred_check_branch
        %1305 = sbr.rel (%p1303) target = $region84
      $region83: #{forward.1} parent=79 // pred_region
        %p1306 = scmp.lt.s32.totalorder %s29, 3
        %s1307 = scalar_select %p1306, %s29, 3
        %p1308 = scmp.lt.s32.totalorder %s30, 1
        %s1309 = scalar_select %p1308, %s30, 1
        %s1310 = smul.addr %s1309, 3
        %s1311 = smul.addr %s1307, 6
        %s1312 = sadd.s32 %s1310, %s1311
        %s1313 = smul.addr %s1312, 8
        %s1314 = scalar_lea.vmem %s10, %s1313
      $region84: #{forward.1} parent=79 // pred_fallthru
        _
      // Predicated region
      $region85: #{forward.1} parent=79 // pred_check
        %p1315 = pneg %p337
      $region86: #{forward.1} parent=79 // pred_check_branch
        %1317 = sbr.rel (%p1315) target = $region88
      $region87: #{forward.1} parent=79 // pred_region
        %p1318 = scmp.lt.s32.totalorder %s29, 3
        %s1319 = scalar_select %p1318, %s29, 3
        %s1320 = smul.addr %s1319, 3
        %s1321 = smul.addr %s1320, 8
        %s1322 = scalar_lea.vmem %s11, %s1321
      $region88: #{forward.1} parent=79 // pred_fallthru
        _
    $region80: #{forward.1} parent=5 // pred_fallthru
      _
  $region6: #{forward.1} parent=0 // loop_footer
    %s22 = sadd.s32 1, %s18
  $region7: #{forward.1} parent=0 // loop_footer_branch
    %17 = sbr.rel target = $region3
  $region8: #{forward.1} parent=0 // loop_exit
    _

</llo_original>
